<compile_context>
chip_gen: v5e
topology: v5e:2x2
jax: 0.10.0
libtpu: 0.0.40
codegen_flags: <defaults>
</compile_context>

<pallas_src>
import functools
import math

import jax
import jax.numpy as jnp
from jax import lax
from jax.experimental import pallas as pl
from jax.experimental.pallas import tpu as pltpu


# ------------------------------ in-kernel helpers ------------------------------
def _layer_norm(x, gamma, beta, eps=1e-5):
    """Row LayerNorm in float32 (torch default eps)."""
    mean = jnp.mean(x, axis=-1, keepdims=True)
    var = jnp.mean(jnp.square(x - mean), axis=-1, keepdims=True)
    return (x - mean) * lax.rsqrt(var + eps) * gamma + beta


def _mha(q_rows, kv_rows, wq, bq, w_kv, b_kv, wo_h, bo, *, num_heads, mask):
    """Multi-head attention for a (TQ, D) query slab against (S_k, D) keys/values.

    wq: (D, D), w_kv: (D, 2D) fused K|V weight, wo_h: (H, hd, D) head-major
    output projection (all in the MXU dtype).  Heads are handled with batched
    einsums; matmuls accumulate in float32, softmax stays in float32.
    """
    tq, d_model = q_rows.shape
    hd = d_model // num_heads
    scale = 1.0 / math.sqrt(hd)
    mxu_dt = wq.dtype                       # bf16 on the MXU, f32 accumulate

    # Projections: one (TQ,D)x(D,D) for Q, one fused (S_k,D)x(D,2D) for K|V.
    q2 = jnp.dot(q_rows.astype(mxu_dt), wq,
                 preferred_element_type=jnp.float32) + bq            # (TQ, D)
    kv2 = jnp.dot(kv_rows.astype(mxu_dt), w_kv,
                  preferred_element_type=jnp.float32) + b_kv         # (S_k, 2D)

    # Head-major (H, rows, hd) stacks built from static lane slices.
    q3 = jnp.stack([q2[:, h * hd:(h + 1) * hd] for h in range(num_heads)], 0)
    k3 = jnp.stack([kv2[:, h * hd:(h + 1) * hd] for h in range(num_heads)], 0)
    v3 = jnp.stack([kv2[:, d_model + h * hd:d_model + (h + 1) * hd]
                    for h in range(num_heads)], 0)

    # Batched-over-heads score matmul -> (H, TQ, S_k) in f32.
    scores = jnp.einsum("hqd,hkd->hqk", q3.astype(mxu_dt), k3.astype(mxu_dt),
                        preferred_element_type=jnp.float32) * scale
    if mask is not None:
        scores = jnp.where(mask[None, :, :], jnp.float32(-1e9), scores)

    # f32 softmax; reciprocal goes to the EUP slot.
    m = jnp.max(scores, axis=-1, keepdims=True)
    e = jnp.exp(scores - m)
    attn = e * pl.reciprocal(jnp.sum(e, axis=-1, keepdims=True), approx=True)

    # Batched context + head-batched output projection, reduced over heads.
    ctx = jnp.einsum("hqk,hkd->hqd", attn.astype(mxu_dt), v3.astype(mxu_dt),
                     preferred_element_type=jnp.float32)             # (H, TQ, hd)
    out = jnp.einsum("hqd,hde->hqe", ctx.astype(mxu_dt), wo_h,
                     preferred_element_type=jnp.float32)             # (H, TQ, D)
    return jnp.sum(out, axis=0) + bo                                 # (TQ, D)


# ------------------------------ the kernel ------------------------------
def decoder_layer_kernel(
    x_ref, enc_ref,
    # self-attention: Q, fused K|V, head-major O
    wq1_ref, bq1_ref, wkv1_ref, bkv1_ref, wo1_ref, bo1_ref,
    # cross-attention
    wq2_ref, bq2_ref, wkv2_ref, bkv2_ref, wo2_ref, bo2_ref,
    # layer norms
    g1_ref, be1_ref, g2_ref, be2_ref,
    # feed-forward
    w1_ref, b1_ref, w2_ref, b2_ref,
    o_ref,
    *, num_heads, q_tile,
):
    qt = pl.program_id(1)
    q_start = pl.multiple_of(qt * q_tile, q_tile)

    x_full = x_ref[0]                                   # (S, D) raw decoder input
    enc = enc_ref[0]                                    # (S_enc, D)
    x_tile = x_ref[0, pl.ds(q_start, q_tile), :]        # (TQ, D) queries of this step
    s_full = x_full.shape[0]

    # Causal mask for this query tile: col > global_row  (== triu(diagonal=1)).
    row = q_start + lax.broadcasted_iota(jnp.int32, (q_tile, s_full), 0)
    col = lax.broadcasted_iota(jnp.int32, (q_tile, s_full), 1)
    causal_mask = col > row

    # 1) causal self-attention + residual (dropout1 == identity) + LN1
    sa = _mha(x_tile, x_full,
              wq1_ref[...], bq1_ref[...], wkv1_ref[...], bkv1_ref[...],
              wo1_ref[...], bo1_ref[...],
              num_heads=num_heads, mask=causal_mask)
    h1 = _layer_norm(x_tile + sa, g1_ref[...], be1_ref[...])

    # 2) encoder-decoder attention (no mask) + residual (dropout2) + LN2
    ca = _mha(h1, enc,
              wq2_ref[...], bq2_ref[...], wkv2_ref[...], bkv2_ref[...],
              wo2_ref[...], bo2_ref[...],
              num_heads=num_heads, mask=None)
    h2 = _layer_norm(h1 + ca, g2_ref[...], be2_ref[...])

    # 3) position-wise FFN (Linear -> ReLU -> Linear) + residual (dropout3)
    w1 = w1_ref[...]
    w2 = w2_ref[...]
    hid = jnp.dot(h2.astype(w1.dtype), w1,
                  preferred_element_type=jnp.float32) + b1_ref[...]
    hid = jnp.maximum(hid, 0.0)
    ff = jnp.dot(hid.astype(w2.dtype), w2,
                 preferred_element_type=jnp.float32) + b2_ref[...]

    o_ref[0] = (h2 + ff).astype(o_ref.dtype)
    # TODO(synk): dropout1/2/3 are no-ops here (inference / eval semantics).
    # TODO(synk): for very long S, switch the KV dimension to flash-style
    # online-softmax tiling instead of materializing (H, TQ, S) scores.


# ------------------------------ wrapper ------------------------------
def _pick_q_tile(s):
    for t in (128, 64, 32, 16, 8):
        if s % t == 0:
            return t
    return s                                   # tiny / odd S: single tile


def decoder_layer(x, encoder_output, params, *, num_heads, mxu_dtype=jnp.bfloat16):
    """Fused decoder-layer forward.  `params` holds unfused torch-style weights;
    fusion (K|V concat, head-major O projection) and the bf16 MXU cast are done
    here on the host."""
    B, S, D = x.shape
    S_enc = encoder_output.shape[1]
    hd = D // num_heads
    q_tile = _pick_q_tile(S)
    n_qt = S // q_tile

    def mxu(p):
        return p.astype(mxu_dtype)

    def f32(p):
        return p.astype(jnp.float32)

    param_list = [
        # self-attention: Q, fused K|V, head-major O
        mxu(params["wq1"]), f32(params["bq1"]),
        mxu(jnp.concatenate([params["wk1"], params["wv1"]], axis=1)),
        f32(jnp.concatenate([params["bk1"], params["bv1"]], axis=1)),
        mxu(params["wo1"].reshape(num_heads, hd, D)), f32(params["bo1"]),
        # cross-attention
        mxu(params["wq2"]), f32(params["bq2"]),
        mxu(jnp.concatenate([params["wk2"], params["wv2"]], axis=1)),
        f32(jnp.concatenate([params["bk2"], params["bv2"]], axis=1)),
        mxu(params["wo2"].reshape(num_heads, hd, D)), f32(params["bo2"]),
        # layer norms (stay f32)
        f32(params["g1"]), f32(params["be1"]),
        f32(params["g2"]), f32(params["be2"]),
        # feed-forward
        mxu(params["w1"]), f32(params["b1"]),
        mxu(params["w2"]), f32(params["b2"]),
    ]

    def full_spec(p):
        zeros = (0,) * p.ndim
        return pl.BlockSpec(p.shape, lambda b, qt, _z=zeros: _z)
        # TODO(synk): at production d_model/d_ff on v7x (64 MiB VMEM), mark the
        # weight specs with pipeline_mode=pl.Buffered(1) or split the FFN into
        # its own pallas_call to fit the smaller VMEM.

    in_specs = (
        [pl.BlockSpec((1, S, D), lambda b, qt: (b, 0, 0)),
         pl.BlockSpec((1, S_enc, D), lambda b, qt: (b, 0, 0))]
        + [full_spec(p) for p in param_list]
    )
    out_spec = pl.BlockSpec((1, q_tile, D), lambda b, qt: (b, qt, 0))
    # TODO(synk): for D < 128 a lane-dense (pad-to-128) output layout would
    # avoid masked partial stores; kept the natural [B, S, D] layout here.

    # VMEM budget: double-buffered activation blocks + weights + headroom for
    # the f32 attention intermediates.
    act_bytes = 4 * (S * D + S_enc * D + q_tile * D)
    w_bytes = sum(int(p.size) * p.dtype.itemsize for p in param_list)
    vmem_limit = int(min(120 << 20,
                         max(32 << 20, 2 * act_bytes + 2 * w_bytes + (16 << 20))))

    kernel = functools.partial(decoder_layer_kernel,
                               num_heads=num_heads, q_tile=q_tile)

    return pl.pallas_call(
        kernel,
        out_shape=jax.ShapeDtypeStruct((B, S, D), jnp.float32),
        grid=(B, n_qt),
        in_specs=in_specs,
        out_specs=out_spec,
        compiler_params=pltpu.CompilerParams(
            dimension_semantics=("parallel", "parallel"),
            vmem_limit_bytes=vmem_limit),
    )(x, encoder_output, *param_list)


# ------------------------------ parameter init ------------------------------
def init_params(key, d_model, d_ff):
    ks = jax.random.split(key, 20)
    s = 1.0 / math.sqrt(d_model)

    def lin_w(k, fan_in, fan_out):
        return jax.random.uniform(k, (fan_in, fan_out), jnp.float32, -s, s)

    def lin_b(k, fan_out):
        # keep biases 2-D (1, fan_out) for TPU-friendly layout
        return jax.random.uniform(k, (1, fan_out), jnp.float32, -s, s)

    p = {}
    # self-attention q/k/v/o
    p["wq1"], p["bq1"] = lin_w(ks[0], d_model, d_model), lin_b(ks[1], d_model)
    p["wk1"], p["bk1"] = lin_w(ks[2], d_model, d_model), lin_b(ks[3], d_model)
    p["wv1"], p["bv1"] = lin_w(ks[4], d_model, d_model), lin_b(ks[5], d_model)
    p["wo1"], p["bo1"] = lin_w(ks[6], d_model, d_model), lin_b(ks[7], d_model)
    # cross-attention q/k/v/o
    p["wq2"], p["bq2"] = lin_w(ks[8], d_model, d_model), lin_b(ks[9], d_model)
    p["wk2"], p["bk2"] = lin_w(ks[10], d_model, d_model), lin_b(ks[11], d_model)
    p["wv2"], p["bv2"] = lin_w(ks[12], d_model, d_model), lin_b(ks[13], d_model)
    p["wo2"], p["bo2"] = lin_w(ks[14], d_model, d_model), lin_b(ks[15], d_model)
    # layer norms (gamma=1, beta=0)
    p["g1"] = jnp.ones((1, d_model), jnp.float32)
    p["be1"] = jnp.zeros((1, d_model), jnp.float32)
    p["g2"] = jnp.ones((1, d_model), jnp.float32)
    p["be2"] = jnp.zeros((1, d_model), jnp.float32)
    # feed-forward
    p["w1"], p["b1"] = lin_w(ks[16], d_model, d_ff), lin_b(ks[17], d_ff)
    p["w2"], p["b2"] = lin_w(ks[18], d_ff, d_model), lin_b(ks[19], d_model)
    return p


# ------------------------------ pure-JAX reference ------------------------------
def decoder_layer_reference(x, enc, params, *, num_heads):
    """Float32 reference mirroring the PyTorch DecoderLayer (dropout = identity)."""
    B, S, D = x.shape
    hd = D // num_heads

    def split_heads(t):
        return t.reshape(B, -1, num_heads, hd).transpose(0, 2, 1, 3)

    def mha(q_in, kv_in, i, mask=None):
        q = q_in @ params[f"wq{i}"] + params[f"bq{i}"]
        k = kv_in @ params[f"wk{i}"] + params[f"bk{i}"]
        v = kv_in @ params[f"wv{i}"] + params[f"bv{i}"]
        qh, kh, vh = split_heads(q), split_heads(k), split_heads(v)
        s = jnp.einsum("bhqd,bhkd->bhqk", qh, kh) / math.sqrt(hd)
        if mask is not None:
            s = jnp.where(mask, -1e9, s)
        a = jax.nn.softmax(s, axis=-1)
        ctx = jnp.einsum("bhqk,bhkd->bhqd", a, vh)
        ctx = ctx.transpose(0, 2, 1, 3).reshape(B, -1, D)
        return ctx @ params[f"wo{i}"] + params[f"bo{i}"]

    def ln(t, g, b):
        mu = t.mean(-1, keepdims=True)
        var = ((t - mu) ** 2).mean(-1, keepdims=True)
        return (t - mu) * lax.rsqrt(var + 1e-5) * g + b

    causal = jnp.triu(jnp.ones((S, S), bool), 1)
    h = ln(x + mha(x, x, 1, causal), params["g1"], params["be1"])
    h = ln(h + mha(h, enc, 2), params["g2"], params["be2"])
    ff = jnp.maximum(h @ params["w1"] + params["b1"], 0.0) @ params["w2"] + params["b2"]
    return h + ff


# ------------------------------ main ------------------------------
if __name__ == "__main__":
    B, S, D = 2, 8, 32
    num_heads = 4
    d_ff = 64

    key = jax.random.PRNGKey(0)
    kx, kenc, kp = jax.random.split(key, 3)
    x = jax.random.normal(kx, (B, S, D), jnp.float32)
    encoder_output = jax.random.normal(kenc, (B, S, D), jnp.float32)
    params = init_params(kp, D, d_ff)

    out = decoder_layer(x, encoder_output, params, num_heads=num_heads)
    out = jax.block_until_ready(out)

    assert out.shape == (B, S, D)
    assert bool(jnp.all(jnp.isfinite(out)))

    ref = decoder_layer_reference(x, encoder_output, params, num_heads=num_heads)
    max_err = float(jnp.max(jnp.abs(out - ref)))
    assert max_err < 2e-1, f"kernel deviates from f32 reference: max_err={max_err}"
    print("KERNEL_OK")
</pallas_src>

<mosaic_0001>
module attributes {stable_mosaic.version = 11 : i64} {
  func.func @decoder_layer_kernel(%arg0: i32, %arg1: i32, %arg2: memref<1x8x32xf32, #tpu.memory_space<vmem>>, %arg3: memref<1x8x32xf32, #tpu.memory_space<vmem>>, %arg4: memref<32x32xbf16, #tpu.memory_space<vmem>>, %arg5: memref<1x32xf32, #tpu.memory_space<vmem>>, %arg6: memref<32x64xbf16, #tpu.memory_space<vmem>>, %arg7: memref<1x64xf32, #tpu.memory_space<vmem>>, %arg8: memref<4x8x32xbf16, #tpu.memory_space<vmem>>, %arg9: memref<1x32xf32, #tpu.memory_space<vmem>>, %arg10: memref<32x32xbf16, #tpu.memory_space<vmem>>, %arg11: memref<1x32xf32, #tpu.memory_space<vmem>>, %arg12: memref<32x64xbf16, #tpu.memory_space<vmem>>, %arg13: memref<1x64xf32, #tpu.memory_space<vmem>>, %arg14: memref<4x8x32xbf16, #tpu.memory_space<vmem>>, %arg15: memref<1x32xf32, #tpu.memory_space<vmem>>, %arg16: memref<1x32xf32, #tpu.memory_space<vmem>>, %arg17: memref<1x32xf32, #tpu.memory_space<vmem>>, %arg18: memref<1x32xf32, #tpu.memory_space<vmem>>, %arg19: memref<1x32xf32, #tpu.memory_space<vmem>>, %arg20: memref<32x64xbf16, #tpu.memory_space<vmem>>, %arg21: memref<1x64xf32, #tpu.memory_space<vmem>>, %arg22: memref<64x32xbf16, #tpu.memory_space<vmem>>, %arg23: memref<1x32xf32, #tpu.memory_space<vmem>>, %arg24: memref<1x8x32xf32, #tpu.memory_space<vmem>>) attributes {dimension_semantics = [#tpu.dimension_semantics<parallel>, #tpu.dimension_semantics<parallel>], iteration_bounds = array<i64: 2, 1>, scalar_prefetch = 0 : i64, scratch_operands = 0 : i64, tpu.core_type = #tpu.core_type<tc>, window_params = [{transform_indices = @transform_0, window_bounds = array<i64: 1, 8, 32>}, {transform_indices = @transform_1, window_bounds = array<i64: 1, 8, 32>}, {pipeline_mode = #tpu.pipeline_mode<synchronous>, transform_indices = @transform_2, window_bounds = array<i64: 32, 32>}, {pipeline_mode = #tpu.pipeline_mode<synchronous>, transform_indices = @transform_3, window_bounds = array<i64: 1, 32>}, {pipeline_mode = #tpu.pipeline_mode<synchronous>, transform_indices = @transform_4, window_bounds = array<i64: 32, 64>}, {pipeline_mode = #tpu.pipeline_mode<synchronous>, transform_indices = @transform_5, window_bounds = array<i64: 1, 64>}, {pipeline_mode = #tpu.pipeline_mode<synchronous>, transform_indices = @transform_6, window_bounds = array<i64: 4, 8, 32>}, {pipeline_mode = #tpu.pipeline_mode<synchronous>, transform_indices = @transform_7, window_bounds = array<i64: 1, 32>}, {pipeline_mode = #tpu.pipeline_mode<synchronous>, transform_indices = @transform_8, window_bounds = array<i64: 32, 32>}, {pipeline_mode = #tpu.pipeline_mode<synchronous>, transform_indices = @transform_9, window_bounds = array<i64: 1, 32>}, {pipeline_mode = #tpu.pipeline_mode<synchronous>, transform_indices = @transform_10, window_bounds = array<i64: 32, 64>}, {pipeline_mode = #tpu.pipeline_mode<synchronous>, transform_indices = @transform_11, window_bounds = array<i64: 1, 64>}, {pipeline_mode = #tpu.pipeline_mode<synchronous>, transform_indices = @transform_12, window_bounds = array<i64: 4, 8, 32>}, {pipeline_mode = #tpu.pipeline_mode<synchronous>, transform_indices = @transform_13, window_bounds = array<i64: 1, 32>}, {pipeline_mode = #tpu.pipeline_mode<synchronous>, transform_indices = @transform_14, window_bounds = array<i64: 1, 32>}, {pipeline_mode = #tpu.pipeline_mode<synchronous>, transform_indices = @transform_15, window_bounds = array<i64: 1, 32>}, {pipeline_mode = #tpu.pipeline_mode<synchronous>, transform_indices = @transform_16, window_bounds = array<i64: 1, 32>}, {pipeline_mode = #tpu.pipeline_mode<synchronous>, transform_indices = @transform_17, window_bounds = array<i64: 1, 32>}, {pipeline_mode = #tpu.pipeline_mode<synchronous>, transform_indices = @transform_18, window_bounds = array<i64: 32, 64>}, {pipeline_mode = #tpu.pipeline_mode<synchronous>, transform_indices = @transform_19, window_bounds = array<i64: 1, 64>}, {pipeline_mode = #tpu.pipeline_mode<synchronous>, transform_indices = @transform_20, window_bounds = array<i64: 64, 32>}, {pipeline_mode = #tpu.pipeline_mode<synchronous>, transform_indices = @transform_21, window_bounds = array<i64: 1, 32>}, {transform_indices = @transform_22, window_bounds = array<i64: 1, 8, 32>}]} {
    %c8_i32 = arith.constant 8 : i32
    %0 = arith.muli %arg1, %c8_i32 : i32
    %1 = tpu.assume_multiple %0, 8 : i32
    %c0 = arith.constant 0 : index
    %c0_0 = arith.constant 0 : index
    %c0_1 = arith.constant 0 : index
    %2 = vector.load %arg2[%c0, %c0_0, %c0_1] : memref<1x8x32xf32, #tpu.memory_space<vmem>>, vector<1x8x32xf32>
    %3 = vector.shape_cast %2 : vector<1x8x32xf32> to vector<8x32xf32>
    %c0_2 = arith.constant 0 : index
    %c0_3 = arith.constant 0 : index
    %c0_4 = arith.constant 0 : index
    %4 = vector.load %arg3[%c0_2, %c0_3, %c0_4] : memref<1x8x32xf32, #tpu.memory_space<vmem>>, vector<1x8x32xf32>
    %5 = vector.shape_cast %4 : vector<1x8x32xf32> to vector<8x32xf32>
    %c0_5 = arith.constant 0 : index
    %6 = arith.index_cast %1 : i32 to index
    %c0_6 = arith.constant 0 : index
    %7 = vector.load %arg2[%c0_5, %6, %c0_6] : memref<1x8x32xf32, #tpu.memory_space<vmem>>, vector<1x8x32xf32>
    %8 = vector.shape_cast %7 : vector<1x8x32xf32> to vector<8x32xf32>
    %9 = tpu.iota {dimensions = array<i32: 0>} : vector<8x8xi32>
    %10 = vector.broadcast %1 : i32 to vector<8x8xi32>
    %11 = arith.addi %10, %9 : vector<8x8xi32>
    %12 = tpu.iota {dimensions = array<i32: 1>} : vector<8x8xi32>
    %13 = arith.cmpi sgt, %12, %11 : vector<8x8xi32>
    %c0_7 = arith.constant 0 : index
    %c0_8 = arith.constant 0 : index
    %14 = vector.load %arg4[%c0_7, %c0_8] : memref<32x32xbf16, #tpu.memory_space<vmem>>, vector<32x32xbf16>
    %c0_9 = arith.constant 0 : index
    %c0_10 = arith.constant 0 : index
    %15 = vector.load %arg5[%c0_9, %c0_10] : memref<1x32xf32, #tpu.memory_space<vmem>>, vector<1x32xf32>
    %c0_11 = arith.constant 0 : index
    %c0_12 = arith.constant 0 : index
    %16 = vector.load %arg6[%c0_11, %c0_12] : memref<32x64xbf16, #tpu.memory_space<vmem>>, vector<32x64xbf16>
    %c0_13 = arith.constant 0 : index
    %c0_14 = arith.constant 0 : index
    %17 = vector.load %arg7[%c0_13, %c0_14] : memref<1x64xf32, #tpu.memory_space<vmem>>, vector<1x64xf32>
    %c0_15 = arith.constant 0 : index
    %c0_16 = arith.constant 0 : index
    %c0_17 = arith.constant 0 : index
    %18 = vector.load %arg8[%c0_15, %c0_16, %c0_17] : memref<4x8x32xbf16, #tpu.memory_space<vmem>>, vector<4x8x32xbf16>
    %c0_18 = arith.constant 0 : index
    %c0_19 = arith.constant 0 : index
    %19 = vector.load %arg9[%c0_18, %c0_19] : memref<1x32xf32, #tpu.memory_space<vmem>>, vector<1x32xf32>
    %20 = arith.truncf %8 : vector<8x32xf32> to vector<8x32xbf16>
    %cst = arith.constant dense<0.000000e+00> : vector<8x32xf32>
    %21 = tpu.matmul %20, %14, %cst {dimension_numbers = #tpu.dot_dimension_numbers<[1], [0], [0], [1], [0, 0, 1, 1], [], []>} : vector<8x32xbf16>, vector<32x32xbf16>, vector<8x32xf32> -> vector<8x32xf32>
    %22 = vector.broadcast %15 : vector<1x32xf32> to vector<8x32xf32>
    %23 = arith.addf %21, %22 : vector<8x32xf32>
    %24 = arith.truncf %3 : vector<8x32xf32> to vector<8x32xbf16>
    %cst_20 = arith.constant dense<0.000000e+00> : vector<8x64xf32>
    %25 = tpu.matmul %24, %16, %cst_20 {dimension_numbers = #tpu.dot_dimension_numbers<[1], [0], [0], [1], [0, 0, 1, 1], [], []>} : vector<8x32xbf16>, vector<32x64xbf16>, vector<8x64xf32> -> vector<8x64xf32>
    %26 = vector.broadcast %17 : vector<1x64xf32> to vector<8x64xf32>
    %27 = arith.addf %25, %26 : vector<8x64xf32>
    %28 = vector.extract_strided_slice %23 {offsets = [0, 0], sizes = [8, 8], strides = [1, 1]} : vector<8x32xf32> to vector<8x8xf32>
    %29 = vector.extract_strided_slice %23 {offsets = [0, 8], sizes = [8, 8], strides = [1, 1]} : vector<8x32xf32> to vector<8x8xf32>
    %30 = vector.extract_strided_slice %23 {offsets = [0, 16], sizes = [8, 8], strides = [1, 1]} : vector<8x32xf32> to vector<8x8xf32>
    %31 = vector.extract_strided_slice %23 {offsets = [0, 24], sizes = [8, 8], strides = [1, 1]} : vector<8x32xf32> to vector<8x8xf32>
    %32 = vector.shape_cast %28 : vector<8x8xf32> to vector<1x8x8xf32>
    %33 = vector.shape_cast %29 : vector<8x8xf32> to vector<1x8x8xf32>
    %34 = vector.shape_cast %30 : vector<8x8xf32> to vector<1x8x8xf32>
    %35 = vector.shape_cast %31 : vector<8x8xf32> to vector<1x8x8xf32>
    %36 = tpu.concatenate %32, %33, %34, %35 in 0 : vector<1x8x8xf32>, vector<1x8x8xf32>, vector<1x8x8xf32>, vector<1x8x8xf32> -> vector<4x8x8xf32>
    %37 = vector.extract_strided_slice %27 {offsets = [0, 0], sizes = [8, 8], strides = [1, 1]} : vector<8x64xf32> to vector<8x8xf32>
    %38 = vector.extract_strided_slice %27 {offsets = [0, 8], sizes = [8, 8], strides = [1, 1]} : vector<8x64xf32> to vector<8x8xf32>
    %39 = vector.extract_strided_slice %27 {offsets = [0, 16], sizes = [8, 8], strides = [1, 1]} : vector<8x64xf32> to vector<8x8xf32>
    %40 = vector.extract_strided_slice %27 {offsets = [0, 24], sizes = [8, 8], strides = [1, 1]} : vector<8x64xf32> to vector<8x8xf32>
    %41 = vector.shape_cast %37 : vector<8x8xf32> to vector<1x8x8xf32>
    %42 = vector.shape_cast %38 : vector<8x8xf32> to vector<1x8x8xf32>
    %43 = vector.shape_cast %39 : vector<8x8xf32> to vector<1x8x8xf32>
    %44 = vector.shape_cast %40 : vector<8x8xf32> to vector<1x8x8xf32>
    %45 = tpu.concatenate %41, %42, %43, %44 in 0 : vector<1x8x8xf32>, vector<1x8x8xf32>, vector<1x8x8xf32>, vector<1x8x8xf32> -> vector<4x8x8xf32>
    %46 = vector.extract_strided_slice %27 {offsets = [0, 32], sizes = [8, 8], strides = [1, 1]} : vector<8x64xf32> to vector<8x8xf32>
    %47 = vector.extract_strided_slice %27 {offsets = [0, 40], sizes = [8, 8], strides = [1, 1]} : vector<8x64xf32> to vector<8x8xf32>
    %48 = vector.extract_strided_slice %27 {offsets = [0, 48], sizes = [8, 8], strides = [1, 1]} : vector<8x64xf32> to vector<8x8xf32>
    %49 = vector.extract_strided_slice %27 {offsets = [0, 56], sizes = [8, 8], strides = [1, 1]} : vector<8x64xf32> to vector<8x8xf32>
    %50 = vector.shape_cast %46 : vector<8x8xf32> to vector<1x8x8xf32>
    %51 = vector.shape_cast %47 : vector<8x8xf32> to vector<1x8x8xf32>
    %52 = vector.shape_cast %48 : vector<8x8xf32> to vector<1x8x8xf32>
    %53 = vector.shape_cast %49 : vector<8x8xf32> to vector<1x8x8xf32>
    %54 = tpu.concatenate %50, %51, %52, %53 in 0 : vector<1x8x8xf32>, vector<1x8x8xf32>, vector<1x8x8xf32>, vector<1x8x8xf32> -> vector<4x8x8xf32>
    %55 = arith.truncf %36 : vector<4x8x8xf32> to vector<4x8x8xbf16>
    %56 = arith.truncf %45 : vector<4x8x8xf32> to vector<4x8x8xbf16>
    "tpu.trace_start"() <{level = 10 : i32, message = "hqd,hkd->hqk"}> : () -> ()
    %cst_21 = arith.constant dense<0.000000e+00> : vector<4x8x8xf32>
    %57 = tpu.matmul %55, %56, %cst_21 {dimension_numbers = #tpu.dot_dimension_numbers<[2], [2], [1], [1], [0, 0, 0, 1, 1, 1], [0], [0]>} : vector<4x8x8xbf16>, vector<4x8x8xbf16>, vector<4x8x8xf32> -> vector<4x8x8xf32>
    "tpu.trace_stop"() : () -> ()
    %cst_22 = arith.constant 0.353553385 : f32
    %58 = vector.broadcast %cst_22 : f32 to vector<4x8x8xf32>
    %59 = arith.mulf %57, %58 : vector<4x8x8xf32>
    %60 = vector.shape_cast %13 : vector<8x8xi1> to vector<1x8x8xi1>
    %cst_23 = arith.constant -1.000000e+09 : f32
    %61 = vector.shape_cast %60 : vector<1x8x8xi1> to vector<1x8x8xi1>
    %62 = vector.broadcast %61 : vector<1x8x8xi1> to vector<4x8x8xi1>
    %63 = vector.broadcast %cst_23 : f32 to vector<4x8x8xf32>
    %64 = arith.select %62, %63, %59 : vector<4x8x8xi1>, vector<4x8x8xf32>
    %cst_24 = arith.constant dense<0xFF800000> : vector<4x8xf32>
    %65 = vector.multi_reduction <maximumf>, %64, %cst_24 [2] : vector<4x8x8xf32> to vector<4x8xf32>
    %66 = vector.shape_cast %65 : vector<4x8xf32> to vector<4x8x1xf32>
    %67 = vector.broadcast %66 : vector<4x8x1xf32> to vector<4x8x8xf32>
    %68 = arith.subf %64, %67 : vector<4x8x8xf32>
    %69 = math.exp %68 : vector<4x8x8xf32>
    %cst_25 = arith.constant dense<0.000000e+00> : vector<4x8xf32>
    %70 = vector.multi_reduction <add>, %69, %cst_25 [2] : vector<4x8x8xf32> to vector<4x8xf32>
    %71 = vector.shape_cast %70 : vector<4x8xf32> to vector<4x8x1xf32>
    %72 = tpu.reciprocal %71 {approx = true} : vector<4x8x1xf32> -> vector<4x8x1xf32>
    %73 = vector.broadcast %72 : vector<4x8x1xf32> to vector<4x8x8xf32>
    %74 = arith.mulf %69, %73 : vector<4x8x8xf32>
    %75 = arith.truncf %74 : vector<4x8x8xf32> to vector<4x8x8xbf16>
    %76 = arith.truncf %54 : vector<4x8x8xf32> to vector<4x8x8xbf16>
    "tpu.trace_start"() <{level = 10 : i32, message = "hqk,hkd->hqd"}> : () -> ()
    %cst_26 = arith.constant dense<0.000000e+00> : vector<4x8x8xf32>
    %77 = tpu.matmul %75, %76, %cst_26 {dimension_numbers = #tpu.dot_dimension_numbers<[2], [1], [1], [2], [0, 0, 0, 1, 1, 2], [0], [0]>} : vector<4x8x8xbf16>, vector<4x8x8xbf16>, vector<4x8x8xf32> -> vector<4x8x8xf32>
    "tpu.trace_stop"() : () -> ()
    %78 = arith.truncf %77 : vector<4x8x8xf32> to vector<4x8x8xbf16>
    "tpu.trace_start"() <{level = 10 : i32, message = "hqd,hde->hqe"}> : () -> ()
    %cst_27 = arith.constant dense<0.000000e+00> : vector<4x8x32xf32>
    %79 = tpu.matmul %78, %18, %cst_27 {dimension_numbers = #tpu.dot_dimension_numbers<[2], [1], [1], [2], [0, 0, 0, 1, 1, 2], [0], [0]>} : vector<4x8x8xbf16>, vector<4x8x32xbf16>, vector<4x8x32xf32> -> vector<4x8x32xf32>
    "tpu.trace_stop"() : () -> ()
    %cst_28 = arith.constant dense<0.000000e+00> : vector<8x32xf32>
    %80 = vector.multi_reduction <add>, %79, %cst_28 [0] : vector<4x8x32xf32> to vector<8x32xf32>
    %81 = vector.broadcast %19 : vector<1x32xf32> to vector<8x32xf32>
    %82 = arith.addf %80, %81 : vector<8x32xf32>
    %83 = arith.addf %8, %82 : vector<8x32xf32>
    %c0_29 = arith.constant 0 : index
    %c0_30 = arith.constant 0 : index
    %84 = vector.load %arg16[%c0_29, %c0_30] : memref<1x32xf32, #tpu.memory_space<vmem>>, vector<1x32xf32>
    %c0_31 = arith.constant 0 : index
    %c0_32 = arith.constant 0 : index
    %85 = vector.load %arg17[%c0_31, %c0_32] : memref<1x32xf32, #tpu.memory_space<vmem>>, vector<1x32xf32>
    %cst_33 = arith.constant dense<0.000000e+00> : vector<8xf32>
    %86 = vector.multi_reduction <add>, %83, %cst_33 [1] : vector<8x32xf32> to vector<8xf32>
    %87 = vector.shape_cast %86 : vector<8xf32> to vector<8x1xf32>
    %cst_34 = arith.constant 3.200000e+01 : f32
    %88 = vector.broadcast %cst_34 : f32 to vector<8x1xf32>
    %89 = arith.divf %87, %88 : vector<8x1xf32>
    %90 = vector.broadcast %89 : vector<8x1xf32> to vector<8x32xf32>
    %91 = arith.subf %83, %90 : vector<8x32xf32>
    %92 = arith.mulf %91, %91 : vector<8x32xf32>
    %cst_35 = arith.constant dense<0.000000e+00> : vector<8xf32>
    %93 = vector.multi_reduction <add>, %92, %cst_35 [1] : vector<8x32xf32> to vector<8xf32>
    %94 = vector.shape_cast %93 : vector<8xf32> to vector<8x1xf32>
    %cst_36 = arith.constant 3.200000e+01 : f32
    %95 = vector.broadcast %cst_36 : f32 to vector<8x1xf32>
    %96 = arith.divf %94, %95 : vector<8x1xf32>
    %97 = vector.broadcast %89 : vector<8x1xf32> to vector<8x32xf32>
    %98 = arith.subf %83, %97 : vector<8x32xf32>
    %cst_37 = arith.constant 9.99999974E-6 : f32
    %99 = vector.broadcast %cst_37 : f32 to vector<8x1xf32>
    %100 = arith.addf %96, %99 : vector<8x1xf32>
    %101 = math.rsqrt %100 : vector<8x1xf32>
    %102 = vector.broadcast %101 : vector<8x1xf32> to vector<8x32xf32>
    %103 = arith.mulf %98, %102 : vector<8x32xf32>
    %104 = vector.broadcast %84 : vector<1x32xf32> to vector<8x32xf32>
    %105 = arith.mulf %103, %104 : vector<8x32xf32>
    %106 = vector.broadcast %85 : vector<1x32xf32> to vector<8x32xf32>
    %107 = arith.addf %105, %106 : vector<8x32xf32>
    %c0_38 = arith.constant 0 : index
    %c0_39 = arith.constant 0 : index
    %108 = vector.load %arg10[%c0_38, %c0_39] : memref<32x32xbf16, #tpu.memory_space<vmem>>, vector<32x32xbf16>
    %c0_40 = arith.constant 0 : index
    %c0_41 = arith.constant 0 : index
    %109 = vector.load %arg11[%c0_40, %c0_41] : memref<1x32xf32, #tpu.memory_space<vmem>>, vector<1x32xf32>
    %c0_42 = arith.constant 0 : index
    %c0_43 = arith.constant 0 : index
    %110 = vector.load %arg12[%c0_42, %c0_43] : memref<32x64xbf16, #tpu.memory_space<vmem>>, vector<32x64xbf16>
    %c0_44 = arith.constant 0 : index
    %c0_45 = arith.constant 0 : index
    %111 = vector.load %arg13[%c0_44, %c0_45] : memref<1x64xf32, #tpu.memory_space<vmem>>, vector<1x64xf32>
    %c0_46 = arith.constant 0 : index
    %c0_47 = arith.constant 0 : index
    %c0_48 = arith.constant 0 : index
    %112 = vector.load %arg14[%c0_46, %c0_47, %c0_48] : memref<4x8x32xbf16, #tpu.memory_space<vmem>>, vector<4x8x32xbf16>
    %c0_49 = arith.constant 0 : index
    %c0_50 = arith.constant 0 : index
    %113 = vector.load %arg15[%c0_49, %c0_50] : memref<1x32xf32, #tpu.memory_space<vmem>>, vector<1x32xf32>
    %114 = arith.truncf %107 : vector<8x32xf32> to vector<8x32xbf16>
    %cst_51 = arith.constant dense<0.000000e+00> : vector<8x32xf32>
    %115 = tpu.matmul %114, %108, %cst_51 {dimension_numbers = #tpu.dot_dimension_numbers<[1], [0], [0], [1], [0, 0, 1, 1], [], []>} : vector<8x32xbf16>, vector<32x32xbf16>, vector<8x32xf32> -> vector<8x32xf32>
    %116 = vector.broadcast %109 : vector<1x32xf32> to vector<8x32xf32>
    %117 = arith.addf %115, %116 : vector<8x32xf32>
    %118 = arith.truncf %5 : vector<8x32xf32> to vector<8x32xbf16>
    %cst_52 = arith.constant dense<0.000000e+00> : vector<8x64xf32>
    %119 = tpu.matmul %118, %110, %cst_52 {dimension_numbers = #tpu.dot_dimension_numbers<[1], [0], [0], [1], [0, 0, 1, 1], [], []>} : vector<8x32xbf16>, vector<32x64xbf16>, vector<8x64xf32> -> vector<8x64xf32>
    %120 = vector.broadcast %111 : vector<1x64xf32> to vector<8x64xf32>
    %121 = arith.addf %119, %120 : vector<8x64xf32>
    %122 = vector.extract_strided_slice %117 {offsets = [0, 0], sizes = [8, 8], strides = [1, 1]} : vector<8x32xf32> to vector<8x8xf32>
    %123 = vector.extract_strided_slice %117 {offsets = [0, 8], sizes = [8, 8], strides = [1, 1]} : vector<8x32xf32> to vector<8x8xf32>
    %124 = vector.extract_strided_slice %117 {offsets = [0, 16], sizes = [8, 8], strides = [1, 1]} : vector<8x32xf32> to vector<8x8xf32>
    %125 = vector.extract_strided_slice %117 {offsets = [0, 24], sizes = [8, 8], strides = [1, 1]} : vector<8x32xf32> to vector<8x8xf32>
    %126 = vector.shape_cast %122 : vector<8x8xf32> to vector<1x8x8xf32>
    %127 = vector.shape_cast %123 : vector<8x8xf32> to vector<1x8x8xf32>
    %128 = vector.shape_cast %124 : vector<8x8xf32> to vector<1x8x8xf32>
    %129 = vector.shape_cast %125 : vector<8x8xf32> to vector<1x8x8xf32>
    %130 = tpu.concatenate %126, %127, %128, %129 in 0 : vector<1x8x8xf32>, vector<1x8x8xf32>, vector<1x8x8xf32>, vector<1x8x8xf32> -> vector<4x8x8xf32>
    %131 = vector.extract_strided_slice %121 {offsets = [0, 0], sizes = [8, 8], strides = [1, 1]} : vector<8x64xf32> to vector<8x8xf32>
    %132 = vector.extract_strided_slice %121 {offsets = [0, 8], sizes = [8, 8], strides = [1, 1]} : vector<8x64xf32> to vector<8x8xf32>
    %133 = vector.extract_strided_slice %121 {offsets = [0, 16], sizes = [8, 8], strides = [1, 1]} : vector<8x64xf32> to vector<8x8xf32>
    %134 = vector.extract_strided_slice %121 {offsets = [0, 24], sizes = [8, 8], strides = [1, 1]} : vector<8x64xf32> to vector<8x8xf32>
    %135 = vector.shape_cast %131 : vector<8x8xf32> to vector<1x8x8xf32>
    %136 = vector.shape_cast %132 : vector<8x8xf32> to vector<1x8x8xf32>
    %137 = vector.shape_cast %133 : vector<8x8xf32> to vector<1x8x8xf32>
    %138 = vector.shape_cast %134 : vector<8x8xf32> to vector<1x8x8xf32>
    %139 = tpu.concatenate %135, %136, %137, %138 in 0 : vector<1x8x8xf32>, vector<1x8x8xf32>, vector<1x8x8xf32>, vector<1x8x8xf32> -> vector<4x8x8xf32>
    %140 = vector.extract_strided_slice %121 {offsets = [0, 32], sizes = [8, 8], strides = [1, 1]} : vector<8x64xf32> to vector<8x8xf32>
    %141 = vector.extract_strided_slice %121 {offsets = [0, 40], sizes = [8, 8], strides = [1, 1]} : vector<8x64xf32> to vector<8x8xf32>
    %142 = vector.extract_strided_slice %121 {offsets = [0, 48], sizes = [8, 8], strides = [1, 1]} : vector<8x64xf32> to vector<8x8xf32>
    %143 = vector.extract_strided_slice %121 {offsets = [0, 56], sizes = [8, 8], strides = [1, 1]} : vector<8x64xf32> to vector<8x8xf32>
    %144 = vector.shape_cast %140 : vector<8x8xf32> to vector<1x8x8xf32>
    %145 = vector.shape_cast %141 : vector<8x8xf32> to vector<1x8x8xf32>
    %146 = vector.shape_cast %142 : vector<8x8xf32> to vector<1x8x8xf32>
    %147 = vector.shape_cast %143 : vector<8x8xf32> to vector<1x8x8xf32>
    %148 = tpu.concatenate %144, %145, %146, %147 in 0 : vector<1x8x8xf32>, vector<1x8x8xf32>, vector<1x8x8xf32>, vector<1x8x8xf32> -> vector<4x8x8xf32>
    %149 = arith.truncf %130 : vector<4x8x8xf32> to vector<4x8x8xbf16>
    %150 = arith.truncf %139 : vector<4x8x8xf32> to vector<4x8x8xbf16>
    "tpu.trace_start"() <{level = 10 : i32, message = "hqd,hkd->hqk"}> : () -> ()
    %cst_53 = arith.constant dense<0.000000e+00> : vector<4x8x8xf32>
    %151 = tpu.matmul %149, %150, %cst_53 {dimension_numbers = #tpu.dot_dimension_numbers<[2], [2], [1], [1], [0, 0, 0, 1, 1, 1], [0], [0]>} : vector<4x8x8xbf16>, vector<4x8x8xbf16>, vector<4x8x8xf32> -> vector<4x8x8xf32>
    "tpu.trace_stop"() : () -> ()
    %cst_54 = arith.constant 0.353553385 : f32
    %152 = vector.broadcast %cst_54 : f32 to vector<4x8x8xf32>
    %153 = arith.mulf %151, %152 : vector<4x8x8xf32>
    %cst_55 = arith.constant dense<0xFF800000> : vector<4x8xf32>
    %154 = vector.multi_reduction <maximumf>, %153, %cst_55 [2] : vector<4x8x8xf32> to vector<4x8xf32>
    %155 = vector.shape_cast %154 : vector<4x8xf32> to vector<4x8x1xf32>
    %156 = vector.broadcast %155 : vector<4x8x1xf32> to vector<4x8x8xf32>
    %157 = arith.subf %153, %156 : vector<4x8x8xf32>
    %158 = math.exp %157 : vector<4x8x8xf32>
    %cst_56 = arith.constant dense<0.000000e+00> : vector<4x8xf32>
    %159 = vector.multi_reduction <add>, %158, %cst_56 [2] : vector<4x8x8xf32> to vector<4x8xf32>
    %160 = vector.shape_cast %159 : vector<4x8xf32> to vector<4x8x1xf32>
    %161 = tpu.reciprocal %160 {approx = true} : vector<4x8x1xf32> -> vector<4x8x1xf32>
    %162 = vector.broadcast %161 : vector<4x8x1xf32> to vector<4x8x8xf32>
    %163 = arith.mulf %158, %162 : vector<4x8x8xf32>
    %164 = arith.truncf %163 : vector<4x8x8xf32> to vector<4x8x8xbf16>
    %165 = arith.truncf %148 : vector<4x8x8xf32> to vector<4x8x8xbf16>
    "tpu.trace_start"() <{level = 10 : i32, message = "hqk,hkd->hqd"}> : () -> ()
    %cst_57 = arith.constant dense<0.000000e+00> : vector<4x8x8xf32>
    %166 = tpu.matmul %164, %165, %cst_57 {dimension_numbers = #tpu.dot_dimension_numbers<[2], [1], [1], [2], [0, 0, 0, 1, 1, 2], [0], [0]>} : vector<4x8x8xbf16>, vector<4x8x8xbf16>, vector<4x8x8xf32> -> vector<4x8x8xf32>
    "tpu.trace_stop"() : () -> ()
    %167 = arith.truncf %166 : vector<4x8x8xf32> to vector<4x8x8xbf16>
    "tpu.trace_start"() <{level = 10 : i32, message = "hqd,hde->hqe"}> : () -> ()
    %cst_58 = arith.constant dense<0.000000e+00> : vector<4x8x32xf32>
    %168 = tpu.matmul %167, %112, %cst_58 {dimension_numbers = #tpu.dot_dimension_numbers<[2], [1], [1], [2], [0, 0, 0, 1, 1, 2], [0], [0]>} : vector<4x8x8xbf16>, vector<4x8x32xbf16>, vector<4x8x32xf32> -> vector<4x8x32xf32>
    "tpu.trace_stop"() : () -> ()
    %cst_59 = arith.constant dense<0.000000e+00> : vector<8x32xf32>
    %169 = vector.multi_reduction <add>, %168, %cst_59 [0] : vector<4x8x32xf32> to vector<8x32xf32>
    %170 = vector.broadcast %113 : vector<1x32xf32> to vector<8x32xf32>
    %171 = arith.addf %169, %170 : vector<8x32xf32>
    %172 = arith.addf %107, %171 : vector<8x32xf32>
    %c0_60 = arith.constant 0 : index
    %c0_61 = arith.constant 0 : index
    %173 = vector.load %arg18[%c0_60, %c0_61] : memref<1x32xf32, #tpu.memory_space<vmem>>, vector<1x32xf32>
    %c0_62 = arith.constant 0 : index
    %c0_63 = arith.constant 0 : index
    %174 = vector.load %arg19[%c0_62, %c0_63] : memref<1x32xf32, #tpu.memory_space<vmem>>, vector<1x32xf32>
    %cst_64 = arith.constant dense<0.000000e+00> : vector<8xf32>
    %175 = vector.multi_reduction <add>, %172, %cst_64 [1] : vector<8x32xf32> to vector<8xf32>
    %176 = vector.shape_cast %175 : vector<8xf32> to vector<8x1xf32>
    %cst_65 = arith.constant 3.200000e+01 : f32
    %177 = vector.broadcast %cst_65 : f32 to vector<8x1xf32>
    %178 = arith.divf %176, %177 : vector<8x1xf32>
    %179 = vector.broadcast %178 : vector<8x1xf32> to vector<8x32xf32>
    %180 = arith.subf %172, %179 : vector<8x32xf32>
    %181 = arith.mulf %180, %180 : vector<8x32xf32>
    %cst_66 = arith.constant dense<0.000000e+00> : vector<8xf32>
    %182 = vector.multi_reduction <add>, %181, %cst_66 [1] : vector<8x32xf32> to vector<8xf32>
    %183 = vector.shape_cast %182 : vector<8xf32> to vector<8x1xf32>
    %cst_67 = arith.constant 3.200000e+01 : f32
    %184 = vector.broadcast %cst_67 : f32 to vector<8x1xf32>
    %185 = arith.divf %183, %184 : vector<8x1xf32>
    %186 = vector.broadcast %178 : vector<8x1xf32> to vector<8x32xf32>
    %187 = arith.subf %172, %186 : vector<8x32xf32>
    %cst_68 = arith.constant 9.99999974E-6 : f32
    %188 = vector.broadcast %cst_68 : f32 to vector<8x1xf32>
    %189 = arith.addf %185, %188 : vector<8x1xf32>
    %190 = math.rsqrt %189 : vector<8x1xf32>
    %191 = vector.broadcast %190 : vector<8x1xf32> to vector<8x32xf32>
    %192 = arith.mulf %187, %191 : vector<8x32xf32>
    %193 = vector.broadcast %173 : vector<1x32xf32> to vector<8x32xf32>
    %194 = arith.mulf %192, %193 : vector<8x32xf32>
    %195 = vector.broadcast %174 : vector<1x32xf32> to vector<8x32xf32>
    %196 = arith.addf %194, %195 : vector<8x32xf32>
    %c0_69 = arith.constant 0 : index
    %c0_70 = arith.constant 0 : index
    %197 = vector.load %arg20[%c0_69, %c0_70] : memref<32x64xbf16, #tpu.memory_space<vmem>>, vector<32x64xbf16>
    %c0_71 = arith.constant 0 : index
    %c0_72 = arith.constant 0 : index
    %198 = vector.load %arg22[%c0_71, %c0_72] : memref<64x32xbf16, #tpu.memory_space<vmem>>, vector<64x32xbf16>
    %199 = arith.truncf %196 : vector<8x32xf32> to vector<8x32xbf16>
    %cst_73 = arith.constant dense<0.000000e+00> : vector<8x64xf32>
    %200 = tpu.matmul %199, %197, %cst_73 {dimension_numbers = #tpu.dot_dimension_numbers<[1], [0], [0], [1], [0, 0, 1, 1], [], []>} : vector<8x32xbf16>, vector<32x64xbf16>, vector<8x64xf32> -> vector<8x64xf32>
    %c0_74 = arith.constant 0 : index
    %c0_75 = arith.constant 0 : index
    %201 = vector.load %arg21[%c0_74, %c0_75] : memref<1x64xf32, #tpu.memory_space<vmem>>, vector<1x64xf32>
    %202 = vector.broadcast %201 : vector<1x64xf32> to vector<8x64xf32>
    %203 = arith.addf %200, %202 : vector<8x64xf32>
    %cst_76 = arith.constant 0.000000e+00 : f32
    %204 = vector.broadcast %cst_76 : f32 to vector<8x64xf32>
    %205 = arith.maximumf %203, %204 : vector<8x64xf32>
    %206 = arith.truncf %205 : vector<8x64xf32> to vector<8x64xbf16>
    %cst_77 = arith.constant dense<0.000000e+00> : vector<8x32xf32>
    %207 = tpu.matmul %206, %198, %cst_77 {dimension_numbers = #tpu.dot_dimension_numbers<[1], [0], [0], [1], [0, 0, 1, 1], [], []>} : vector<8x64xbf16>, vector<64x32xbf16>, vector<8x32xf32> -> vector<8x32xf32>
    %c0_78 = arith.constant 0 : index
    %c0_79 = arith.constant 0 : index
    %208 = vector.load %arg23[%c0_78, %c0_79] : memref<1x32xf32, #tpu.memory_space<vmem>>, vector<1x32xf32>
    %209 = vector.broadcast %208 : vector<1x32xf32> to vector<8x32xf32>
    %210 = arith.addf %207, %209 : vector<8x32xf32>
    %211 = arith.addf %196, %210 : vector<8x32xf32>
    %c0_80 = arith.constant 0 : index
    %c0_81 = arith.constant 0 : index
    %c0_82 = arith.constant 0 : index
    %212 = vector.load %arg24[%c0_80, %c0_81, %c0_82] : memref<1x8x32xf32, #tpu.memory_space<vmem>>, vector<1x8x32xf32>
    %213 = vector.shape_cast %212 : vector<1x8x32xf32> to vector<8x32xf32>
    %214 = vector.shape_cast %211 : vector<8x32xf32> to vector<1x8x32xf32>
    tpu.vector_store %arg24[%c0_80, %c0_81, %c0_82], %214 {strides = array<i32>} : memref<1x8x32xf32, #tpu.memory_space<vmem>>, vector<1x8x32xf32>,
    return
  }
  func.func @transform_0(%arg0: i32, %arg1: i32) -> (i32, i32, i32) {
    %c0_i32 = arith.constant 0 : i32
    %c0_i32_0 = arith.constant 0 : i32
    %c0_i32_1 = arith.constant 0 : i32
    return %arg0, %c0_i32, %c0_i32_0 : i32, i32, i32
  }
  func.func @transform_1(%arg0: i32, %arg1: i32) -> (i32, i32, i32) {
    %c0_i32 = arith.constant 0 : i32
    %c0_i32_0 = arith.constant 0 : i32
    %c0_i32_1 = arith.constant 0 : i32
    return %arg0, %c0_i32, %c0_i32_0 : i32, i32, i32
  }
  func.func @transform_2(%arg0: i32, %arg1: i32) -> (i32, i32) {
    %c0_i32 = arith.constant 0 : i32
    %c0_i32_0 = arith.constant 0 : i32
    %c0_i32_1 = arith.constant 0 : i32
    return %c0_i32, %c0_i32_0 : i32, i32
  }
  func.func @transform_3(%arg0: i32, %arg1: i32) -> (i32, i32) {
    %c0_i32 = arith.constant 0 : i32
    %c0_i32_0 = arith.constant 0 : i32
    %c0_i32_1 = arith.constant 0 : i32
    return %c0_i32, %c0_i32_0 : i32, i32
  }
  func.func @transform_4(%arg0: i32, %arg1: i32) -> (i32, i32) {
    %c0_i32 = arith.constant 0 : i32
    %c0_i32_0 = arith.constant 0 : i32
    %c0_i32_1 = arith.constant 0 : i32
    return %c0_i32, %c0_i32_0 : i32, i32
  }
  func.func @transform_5(%arg0: i32, %arg1: i32) -> (i32, i32) {
    %c0_i32 = arith.constant 0 : i32
    %c0_i32_0 = arith.constant 0 : i32
    %c0_i32_1 = arith.constant 0 : i32
    return %c0_i32, %c0_i32_0 : i32, i32
  }
  func.func @transform_6(%arg0: i32, %arg1: i32) -> (i32, i32, i32) {
    %c0_i32 = arith.constant 0 : i32
    %c0_i32_0 = arith.constant 0 : i32
    %c0_i32_1 = arith.constant 0 : i32
    %c0_i32_2 = arith.constant 0 : i32
    return %c0_i32, %c0_i32_0, %c0_i32_1 : i32, i32, i32
  }
  func.func @transform_7(%arg0: i32, %arg1: i32) -> (i32, i32) {
    %c0_i32 = arith.constant 0 : i32
    %c0_i32_0 = arith.constant 0 : i32
    %c0_i32_1 = arith.constant 0 : i32
    return %c0_i32, %c0_i32_0 : i32, i32
  }
  func.func @transform_8(%arg0: i32, %arg1: i32) -> (i32, i32) {
    %c0_i32 = arith.constant 0 : i32
    %c0_i32_0 = arith.constant 0 : i32
    %c0_i32_1 = arith.constant 0 : i32
    return %c0_i32, %c0_i32_0 : i32, i32
  }
  func.func @transform_9(%arg0: i32, %arg1: i32) -> (i32, i32) {
    %c0_i32 = arith.constant 0 : i32
    %c0_i32_0 = arith.constant 0 : i32
    %c0_i32_1 = arith.constant 0 : i32
    return %c0_i32, %c0_i32_0 : i32, i32
  }
  func.func @transform_10(%arg0: i32, %arg1: i32) -> (i32, i32) {
    %c0_i32 = arith.constant 0 : i32
    %c0_i32_0 = arith.constant 0 : i32
    %c0_i32_1 = arith.constant 0 : i32
    return %c0_i32, %c0_i32_0 : i32, i32
  }
  func.func @transform_11(%arg0: i32, %arg1: i32) -> (i32, i32) {
    %c0_i32 = arith.constant 0 : i32
    %c0_i32_0 = arith.constant 0 : i32
    %c0_i32_1 = arith.constant 0 : i32
    return %c0_i32, %c0_i32_0 : i32, i32
  }
  func.func @transform_12(%arg0: i32, %arg1: i32) -> (i32, i32, i32) {
    %c0_i32 = arith.constant 0 : i32
    %c0_i32_0 = arith.constant 0 : i32
    %c0_i32_1 = arith.constant 0 : i32
    %c0_i32_2 = arith.constant 0 : i32
    return %c0_i32, %c0_i32_0, %c0_i32_1 : i32, i32, i32
  }
  func.func @transform_13(%arg0: i32, %arg1: i32) -> (i32, i32) {
    %c0_i32 = arith.constant 0 : i32
    %c0_i32_0 = arith.constant 0 : i32
    %c0_i32_1 = arith.constant 0 : i32
    return %c0_i32, %c0_i32_0 : i32, i32
  }
  func.func @transform_14(%arg0: i32, %arg1: i32) -> (i32, i32) {
    %c0_i32 = arith.constant 0 : i32
    %c0_i32_0 = arith.constant 0 : i32
    %c0_i32_1 = arith.constant 0 : i32
    return %c0_i32, %c0_i32_0 : i32, i32
  }
  func.func @transform_15(%arg0: i32, %arg1: i32) -> (i32, i32) {
    %c0_i32 = arith.constant 0 : i32
    %c0_i32_0 = arith.constant 0 : i32
    %c0_i32_1 = arith.constant 0 : i32
    return %c0_i32, %c0_i32_0 : i32, i32
  }
  func.func @transform_16(%arg0: i32, %arg1: i32) -> (i32, i32) {
    %c0_i32 = arith.constant 0 : i32
    %c0_i32_0 = arith.constant 0 : i32
    %c0_i32_1 = arith.constant 0 : i32
    return %c0_i32, %c0_i32_0 : i32, i32
  }
  func.func @transform_17(%arg0: i32, %arg1: i32) -> (i32, i32) {
    %c0_i32 = arith.constant 0 : i32
    %c0_i32_0 = arith.constant 0 : i32
    %c0_i32_1 = arith.constant 0 : i32
    return %c0_i32, %c0_i32_0 : i32, i32
  }
  func.func @transform_18(%arg0: i32, %arg1: i32) -> (i32, i32) {
    %c0_i32 = arith.constant 0 : i32
    %c0_i32_0 = arith.constant 0 : i32
    %c0_i32_1 = arith.constant 0 : i32
    return %c0_i32, %c0_i32_0 : i32, i32
  }
  func.func @transform_19(%arg0: i32, %arg1: i32) -> (i32, i32) {
    %c0_i32 = arith.constant 0 : i32
    %c0_i32_0 = arith.constant 0 : i32
    %c0_i32_1 = arith.constant 0 : i32
    return %c0_i32, %c0_i32_0 : i32, i32
  }
  func.func @transform_20(%arg0: i32, %arg1: i32) -> (i32, i32) {
    %c0_i32 = arith.constant 0 : i32
    %c0_i32_0 = arith.constant 0 : i32
    %c0_i32_1 = arith.constant 0 : i32
    return %c0_i32, %c0_i32_0 : i32, i32
  }
  func.func @transform_21(%arg0: i32, %arg1: i32) -> (i32, i32) {
    %c0_i32 = arith.constant 0 : i32
    %c0_i32_0 = arith.constant 0 : i32
    %c0_i32_1 = arith.constant 0 : i32
    return %c0_i32, %c0_i32_0 : i32, i32
  }
  func.func @transform_22(%arg0: i32, %arg1: i32) -> (i32, i32, i32) {
    %c0_i32 = arith.constant 0 : i32
    %c0_i32_0 = arith.constant 0 : i32
    return %arg0, %arg1, %c0_i32 : i32, i32, i32
  }
}

</mosaic_0001>

<llo_original>
// kernel: tpu_custom_call.1
$region0: #{tpu_custom_call.1}
  #allocation0 [shape = 'u32[]', space=smem, size = 0x4, offset = 0x4, fixed_abs, tag = 'smem constant byte address 0x4 - core index']
  #allocation1 [shape = 'u32[72,128]{1,0:T(1,128)}', space=vmem, size = 0x9000, scoped, tag = 'internal scratch']
  %s0 = inlined_call_operand.vmem [shape: f32[2,8,32], index: 0, kind: input, shape index: {}]
  %s1 = inlined_call_operand.vmem [shape: f32[2,8,32], index: 1, kind: input, shape index: {}]
  %s2 = inlined_call_operand.vmem [shape: bf16[32,32], index: 2, kind: input, shape index: {}]
  %s3 = inlined_call_operand.vmem [shape: f32[1,32], index: 3, kind: input, shape index: {}]
  %s4 = inlined_call_operand.hbm [shape: bf16[32,64], index: 4, kind: input, shape index: {}]
  %s5 = inlined_call_operand.vmem [shape: f32[1,64], index: 5, kind: input, shape index: {}]
  %s6 = inlined_call_operand.hbm [shape: bf16[4,8,32], index: 6, kind: input, shape index: {}]
  %s7 = inlined_call_operand.vmem [shape: f32[1,32], index: 7, kind: input, shape index: {}]
  %s8 = inlined_call_operand.hbm [shape: bf16[32,32], index: 8, kind: input, shape index: {}]
  %s9 = inlined_call_operand.hbm [shape: f32[1,32], index: 9, kind: input, shape index: {}]
  %s10 = inlined_call_operand.hbm [shape: bf16[32,64], index: 10, kind: input, shape index: {}]
  %s11 = inlined_call_operand.hbm [shape: f32[1,64], index: 11, kind: input, shape index: {}]
  %s12 = inlined_call_operand.hbm [shape: bf16[4,8,32], index: 12, kind: input, shape index: {}]
  %s13 = inlined_call_operand.hbm [shape: f32[1,32], index: 13, kind: input, shape index: {}]
  %s14 = inlined_call_operand.hbm [shape: f32[1,32], index: 14, kind: input, shape index: {}]
  %s15 = inlined_call_operand.hbm [shape: f32[1,32], index: 15, kind: input, shape index: {}]
  %s16 = inlined_call_operand.hbm [shape: f32[1,32], index: 16, kind: input, shape index: {}]
  %s17 = inlined_call_operand.hbm [shape: f32[1,32], index: 17, kind: input, shape index: {}]
  %s18 = inlined_call_operand.hbm [shape: bf16[32,64], index: 18, kind: input, shape index: {}]
  %s19 = inlined_call_operand.hbm [shape: f32[1,64], index: 19, kind: input, shape index: {}]
  %s20 = inlined_call_operand.vmem [shape: bf16[64,32], index: 20, kind: input, shape index: {}]
  %s21 = inlined_call_operand.vmem [shape: f32[1,32], index: 21, kind: input, shape index: {}]
  %s22 = inlined_call_operand.hbm [shape: f32[2,8,32], index: 22, kind: output, shape index: {}]
  %s23 = sld [smem:[#allocation0]]
  $region177: #{tpu_custom_call.1} parent=0
    _
  %s25 = ssub.s32 1, %s23
  %s26 = scalar_select 0, %s25, %s23
  $region1: #{tpu_custom_call.1} parent=0
    #allocation2 [shape = 'u8[8192]{0}', space=vmem, size = 0x2000, scoped, tag = 'input window, operand 4, single buffered']
    #allocation3 [shape = 's32[2]{0}', space=sflag, size = 0x8, scoped, tag = 'scoped memory for tpu_custom_call.1']
    #allocation4 [shape = 's32[2]{0}', space=sflag, size = 0x8, scoped, tag = 'scoped memory for tpu_custom_call.1']
    #allocation5 [shape = 'u8[8192]{0}', space=vmem, size = 0x2000, scoped, tag = 'input window, operand 6, single buffered']
    #allocation6 [shape = 's32[1]{0}', space=sflag, size = 0x4, scoped, tag = 'scoped memory for tpu_custom_call.1']
    #allocation7 [shape = 'u8[8192]{0}', space=vmem, size = 0x2000, scoped, tag = 'input window, operand 8, single buffered']
    #allocation8 [shape = 'u8[512]{0}', space=vmem, size = 0x400, scoped, tag = 'input window, operand 9, single buffered']
    #allocation9 [shape = 's32[1]{0}', space=sflag, size = 0x4, scoped, tag = 'scoped memory for tpu_custom_call.1']
    #allocation10 [shape = 'u8[8192]{0}', space=vmem, size = 0x2000, scoped, tag = 'input window, operand 10, single buffered']
    #allocation11 [shape = 'u8[512]{0}', space=vmem, size = 0x400, scoped, tag = 'input window, operand 11, single buffered']
    #allocation12 [shape = 's32[1]{0}', space=sflag, size = 0x4, scoped, tag = 'scoped memory for tpu_custom_call.1']
    #allocation13 [shape = 'u8[8192]{0}', space=vmem, size = 0x2000, scoped, tag = 'input window, operand 12, single buffered']
    #allocation14 [shape = 'u8[512]{0}', space=vmem, size = 0x400, scoped, tag = 'input window, operand 13, single buffered']
    #allocation15 [shape = 's32[1]{0}', space=sflag, size = 0x4, scoped, tag = 'scoped memory for tpu_custom_call.1']
    #allocation16 [shape = 'u8[512]{0}', space=vmem, size = 0x400, scoped, tag = 'input window, operand 14, single buffered']
    #allocation17 [shape = 'u8[512]{0}', space=vmem, size = 0x400, scoped, tag = 'input window, operand 15, single buffered']
    #allocation18 [shape = 's32[1]{0}', space=sflag, size = 0x4, scoped, tag = 'scoped memory for tpu_custom_call.1']
    #allocation19 [shape = 'u8[512]{0}', space=vmem, size = 0x400, scoped, tag = 'input window, operand 16, single buffered']
    #allocation20 [shape = 'u8[512]{0}', space=vmem, size = 0x400, scoped, tag = 'input window, operand 17, single buffered']
    #allocation21 [shape = 's32[1]{0}', space=sflag, size = 0x4, scoped, tag = 'scoped memory for tpu_custom_call.1']
    #allocation22 [shape = 'u8[8192]{0}', space=vmem, size = 0x2000, scoped, tag = 'input window, operand 18, single buffered']
    #allocation23 [shape = 'u8[512]{0}', space=vmem, size = 0x400, scoped, tag = 'input window, operand 19, single buffered']
    #allocation24 [shape = 's32[1]{0}', space=sflag, size = 0x4, scoped, tag = 'scoped memory for tpu_custom_call.1']
    #allocation25 [shape = 'u8[8192]{0}', space=vmem, size = 0x2000, scoped, tag = 'output window, operand 0']
    %27 = vsyncpa [#allocation3], 0
    %28 = vsyncpa [#allocation6], 0
    %29 = vsyncpa [#allocation9], 0
    %30 = vsyncpa [#allocation12], 0
    %31 = vsyncpa [#allocation15], 0
    %32 = vsyncpa [#allocation18], 0
    %33 = vsyncpa [#allocation21], 0
    %34 = vsyncpa [#allocation24], 0
    %35 = vsyncpa [#allocation4], 0
    %s36 = scalar_lea.sflag [#allocation4], 1
    %37 = vsyncpa %s36, 0
    loop: start=0, step=1, limit=4
    $region2: #{tpu_custom_call.1} parent=1 // loop_pre_header
      _
    $region3: #{tpu_custom_call.1} parent=1 // loop_header
      %s39 = sphi 0, %s43
      %p40 = scmp.ge.s32.totalorder %s39, 4
      %s46 = sphi 0, %s58
      %s47 = sphi 0, %s54
      %s48 = sphi 0, %s46
      %s49 = sphi 0, %s47
      %s50 = sphi 0, %s48
      %s51 = sphi 0, %s49
      %s61 = sphi 0, %s63
      %s64 = sphi 0, %s61
      %s65 = sphi 0, %s64
      %s81 = sphi 0, %s65
      %s87 = sphi 0, %s89
      %s90 = sphi 0, %s87
      %s91 = sphi 0, %s90
      %s107 = sphi 0, %s91
      %s111 = sphi 0, %s111
      %s113 = sphi 0, %s111
      %s114 = sphi 0, %s113
      %s128 = sphi 0, %s114
      %s132 = sphi 0, %s132
      %s134 = sphi 0, %s132
      %s135 = sphi 0, %s134
      %s149 = sphi 0, %s135
      %s153 = sphi 0, %s153
      %s155 = sphi 0, %s153
      %s156 = sphi 0, %s155
      %s170 = sphi 0, %s156
      %s174 = sphi 0, %s174
      %s176 = sphi 0, %s174
      %s177 = sphi 0, %s176
      %s191 = sphi 0, %s177
      %s195 = sphi 0, %s195
      %s197 = sphi 0, %s195
      %s198 = sphi 0, %s197
      %s212 = sphi 0, %s198
      %s216 = sphi 0, %s216
      %s218 = sphi 0, %s216
      %s219 = sphi 0, %s218
      %s233 = sphi 0, %s219
      %s237 = sphi 0, %s237
      %s239 = sphi 0, %s237
      %s240 = sphi 0, %s239
      %s254 = sphi 0, %s240
      %s258 = sphi 0, %s258
      %s260 = sphi 0, %s258
      %s261 = sphi 0, %s260
      %s275 = sphi 0, %s261
      %s279 = sphi 0, %s279
      %s281 = sphi 0, %s279
      %s282 = sphi 0, %s281
      %s296 = sphi 0, %s282
      %s300 = sphi 0, %s300
      %s302 = sphi 0, %s300
      %s303 = sphi 0, %s302
      %s317 = sphi 0, %s303
      %s321 = sphi 0, %s321
      %s323 = sphi 0, %s321
      %s324 = sphi 0, %s323
      %s338 = sphi 0, %s324
      %s342 = sphi 0, %s342
      %s344 = sphi 0, %s342
      %s345 = sphi 0, %s344
      %s359 = sphi 0, %s345
      %s363 = sphi 0, %s363
      %s365 = sphi 0, %s363
      %s366 = sphi 0, %s365
      %s380 = sphi 0, %s366
      %s384 = sphi 0, %s384
      %s386 = sphi 0, %s384
      %s387 = sphi 0, %s386
      %s401 = sphi 0, %s387
      %s405 = sphi 0, %s405
      %s407 = sphi 0, %s405
      %s408 = sphi 0, %s407
      %s422 = sphi 0, %s408
      %s426 = sphi 0, %s426
      %s428 = sphi 0, %s426
      %s429 = sphi 0, %s428
      %s443 = sphi 0, %s429
      %s447 = sphi 0, %s447
      %s449 = sphi 0, %s447
      %s450 = sphi 0, %s449
      %s464 = sphi 0, %s450
      %s468 = sphi 0, %s468
      %s470 = sphi 0, %s468
      %s471 = sphi 0, %s470
      %s485 = sphi 0, %s471
      %s489 = sphi 0, %s489
      %s491 = sphi 0, %s489
      %s492 = sphi 0, %s491
      %s506 = sphi 0, %s492
      %s510 = sphi 0, %s510
      %s512 = sphi 0, %s510
      %s513 = sphi 0, %s512
      %s527 = sphi 0, %s513
      %s535 = sphi 0, %s537
      %s538 = sphi 0, %s535
      %s539 = sphi 0, %s538
      %s555 = sphi 0, %s539
    $region4: #{tpu_custom_call.1} parent=1 // loop_header_branch
      %42 = sbr.rel (%p40) target = $region8
    $region5: #{tpu_custom_call.1} parent=1 // loop_body
      %s44 = ssub.s32 %s39, 1
      %s45 = ssub.s32 %s39, 2
      %s52 = sadd.s32 1, %s47
      %p53 = scmp.ge.s32.totalorder %s52, 1
      %s54 = scalar_select %p53, 0, %s52
      %s55 = sadd.s32 1, %s46
      %s56 = scalar_select %p53, %s55, %s46
      %p57 = scmp.ge.s32.totalorder %s56, 2
      %s58 = scalar_select %p57, 0, %s56
      %s59 = ssub.s32 %s46, %s58
      %p60 = scmp.eq.s32.totalorder %s59, 0
      %s62 = sadd.s32 %s61, 1
      %s63 = scalar_select %p60, %s61, %s62
      %p66 = pneg %p60
      %p67 = scmp.eq.s32.totalorder %s39, 1
      %p68 = por %p66, %p67
      %p69 = scmp.ne.s32.totalorder %s61, %s64
      %p70 = scmp.eq.s32.totalorder %s39, 0
      %p71 = por %p69, %p70
      %p72 = scmp.ne.s32.totalorder %s61, %s64
      %p73 = scmp.eq.s32.totalorder %s44, 1
      %p74 = por %p72, %p73
      %p75 = scmp.ne.s32.totalorder %s64, %s65
      %p76 = scmp.eq.s32.totalorder %s44, 0
      %p77 = por %p75, %p76
      %p78 = scmp.ne.s32.totalorder %s64, %s65
      %p79 = scmp.eq.s32.totalorder %s45, 1
      %p80 = por %p78, %p79
      %p82 = scmp.ne.s32.totalorder %s65, %s81
      %p83 = scmp.eq.s32.totalorder %s45, 0
      %p84 = por %p82, %p83
      %s85 = ssub.s32 %s46, %s58
      %p86 = scmp.eq.s32.totalorder %s85, 0
      %s88 = sadd.s32 %s87, 1
      %s89 = scalar_select %p86, %s87, %s88
      %p92 = pneg %p86
      %p93 = scmp.eq.s32.totalorder %s39, 1
      %p94 = por %p92, %p93
      %p95 = scmp.ne.s32.totalorder %s87, %s90
      %p96 = scmp.eq.s32.totalorder %s39, 0
      %p97 = por %p95, %p96
      %p98 = scmp.ne.s32.totalorder %s87, %s90
      %p99 = scmp.eq.s32.totalorder %s44, 1
      %p100 = por %p98, %p99
      %p101 = scmp.ne.s32.totalorder %s90, %s91
      %p102 = scmp.eq.s32.totalorder %s44, 0
      %p103 = por %p101, %p102
      %p104 = scmp.ne.s32.totalorder %s90, %s91
      %p105 = scmp.eq.s32.totalorder %s45, 1
      %p106 = por %p104, %p105
      %p108 = scmp.ne.s32.totalorder %s91, %s107
      %p109 = scmp.eq.s32.totalorder %s45, 0
      %p110 = por %p108, %p109
      %s112 = sadd.s32 %s111, 1
      %p115 = scmp.eq.s32.totalorder %s39, 1
      %p116 = scmp.ne.s32.totalorder %s111, %s113
      %p117 = scmp.eq.s32.totalorder %s39, 0
      %p118 = por %p116, %p117
      %p119 = scmp.ne.s32.totalorder %s111, %s113
      %p120 = scmp.eq.s32.totalorder %s44, 1
      %p121 = por %p119, %p120
      %p122 = scmp.ne.s32.totalorder %s113, %s114
      %p123 = scmp.eq.s32.totalorder %s44, 0
      %p124 = por %p122, %p123
      %p125 = scmp.ne.s32.totalorder %s113, %s114
      %p126 = scmp.eq.s32.totalorder %s45, 1
      %p127 = por %p125, %p126
      %p129 = scmp.ne.s32.totalorder %s114, %s128
      %p130 = scmp.eq.s32.totalorder %s45, 0
      %p131 = por %p129, %p130
      %s133 = sadd.s32 %s132, 1
      %p136 = scmp.eq.s32.totalorder %s39, 1
      %p137 = scmp.ne.s32.totalorder %s132, %s134
      %p138 = scmp.eq.s32.totalorder %s39, 0
      %p139 = por %p137, %p138
      %p140 = scmp.ne.s32.totalorder %s132, %s134
      %p141 = scmp.eq.s32.totalorder %s44, 1
      %p142 = por %p140, %p141
      %p143 = scmp.ne.s32.totalorder %s134, %s135
      %p144 = scmp.eq.s32.totalorder %s44, 0
      %p145 = por %p143, %p144
      %p146 = scmp.ne.s32.totalorder %s134, %s135
      %p147 = scmp.eq.s32.totalorder %s45, 1
      %p148 = por %p146, %p147
      %p150 = scmp.ne.s32.totalorder %s135, %s149
      %p151 = scmp.eq.s32.totalorder %s45, 0
      %p152 = por %p150, %p151
      %s154 = sadd.s32 %s153, 1
      %p157 = scmp.eq.s32.totalorder %s39, 1
      %p158 = scmp.ne.s32.totalorder %s153, %s155
      %p159 = scmp.eq.s32.totalorder %s39, 0
      %p160 = por %p158, %p159
      %p161 = scmp.ne.s32.totalorder %s153, %s155
      %p162 = scmp.eq.s32.totalorder %s44, 1
      %p163 = por %p161, %p162
      %p164 = scmp.ne.s32.totalorder %s155, %s156
      %p165 = scmp.eq.s32.totalorder %s44, 0
      %p166 = por %p164, %p165
      %p167 = scmp.ne.s32.totalorder %s155, %s156
      %p168 = scmp.eq.s32.totalorder %s45, 1
      %p169 = por %p167, %p168
      %p171 = scmp.ne.s32.totalorder %s156, %s170
      %p172 = scmp.eq.s32.totalorder %s45, 0
      %p173 = por %p171, %p172
      %s175 = sadd.s32 %s174, 1
      %p178 = scmp.eq.s32.totalorder %s39, 1
      %p179 = scmp.ne.s32.totalorder %s174, %s176
      %p180 = scmp.eq.s32.totalorder %s39, 0
      %p181 = por %p179, %p180
      %p182 = scmp.ne.s32.totalorder %s174, %s176
      %p183 = scmp.eq.s32.totalorder %s44, 1
      %p184 = por %p182, %p183
      %p185 = scmp.ne.s32.totalorder %s176, %s177
      %p186 = scmp.eq.s32.totalorder %s44, 0
      %p187 = por %p185, %p186
      %p188 = scmp.ne.s32.totalorder %s176, %s177
      %p189 = scmp.eq.s32.totalorder %s45, 1
      %p190 = por %p188, %p189
      %p192 = scmp.ne.s32.totalorder %s177, %s191
      %p193 = scmp.eq.s32.totalorder %s45, 0
      %p194 = por %p192, %p193
      %s196 = sadd.s32 %s195, 1
      %p199 = scmp.eq.s32.totalorder %s39, 1
      %p200 = scmp.ne.s32.totalorder %s195, %s197
      %p201 = scmp.eq.s32.totalorder %s39, 0
      %p202 = por %p200, %p201
      %p203 = scmp.ne.s32.totalorder %s195, %s197
      %p204 = scmp.eq.s32.totalorder %s44, 1
      %p205 = por %p203, %p204
      %p206 = scmp.ne.s32.totalorder %s197, %s198
      %p207 = scmp.eq.s32.totalorder %s44, 0
      %p208 = por %p206, %p207
      %p209 = scmp.ne.s32.totalorder %s197, %s198
      %p210 = scmp.eq.s32.totalorder %s45, 1
      %p211 = por %p209, %p210
      %p213 = scmp.ne.s32.totalorder %s198, %s212
      %p214 = scmp.eq.s32.totalorder %s45, 0
      %p215 = por %p213, %p214
      %s217 = sadd.s32 %s216, 1
      %p220 = scmp.eq.s32.totalorder %s39, 1
      %p221 = scmp.ne.s32.totalorder %s216, %s218
      %p222 = scmp.eq.s32.totalorder %s39, 0
      %p223 = por %p221, %p222
      %p224 = scmp.ne.s32.totalorder %s216, %s218
      %p225 = scmp.eq.s32.totalorder %s44, 1
      %p226 = por %p224, %p225
      %p227 = scmp.ne.s32.totalorder %s218, %s219
      %p228 = scmp.eq.s32.totalorder %s44, 0
      %p229 = por %p227, %p228
      %p230 = scmp.ne.s32.totalorder %s218, %s219
      %p231 = scmp.eq.s32.totalorder %s45, 1
      %p232 = por %p230, %p231
      %p234 = scmp.ne.s32.totalorder %s219, %s233
      %p235 = scmp.eq.s32.totalorder %s45, 0
      %p236 = por %p234, %p235
      %s238 = sadd.s32 %s237, 1
      %p241 = scmp.eq.s32.totalorder %s39, 1
      %p242 = scmp.ne.s32.totalorder %s237, %s239
      %p243 = scmp.eq.s32.totalorder %s39, 0
      %p244 = por %p242, %p243
      %p245 = scmp.ne.s32.totalorder %s237, %s239
      %p246 = scmp.eq.s32.totalorder %s44, 1
      %p247 = por %p245, %p246
      %p248 = scmp.ne.s32.totalorder %s239, %s240
      %p249 = scmp.eq.s32.totalorder %s44, 0
      %p250 = por %p248, %p249
      %p251 = scmp.ne.s32.totalorder %s239, %s240
      %p252 = scmp.eq.s32.totalorder %s45, 1
      %p253 = por %p251, %p252
      %p255 = scmp.ne.s32.totalorder %s240, %s254
      %p256 = scmp.eq.s32.totalorder %s45, 0
      %p257 = por %p255, %p256
      %s259 = sadd.s32 %s258, 1
      %p262 = scmp.eq.s32.totalorder %s39, 1
      %p263 = scmp.ne.s32.totalorder %s258, %s260
      %p264 = scmp.eq.s32.totalorder %s39, 0
      %p265 = por %p263, %p264
      %p266 = scmp.ne.s32.totalorder %s258, %s260
      %p267 = scmp.eq.s32.totalorder %s44, 1
      %p268 = por %p266, %p267
      %p269 = scmp.ne.s32.totalorder %s260, %s261
      %p270 = scmp.eq.s32.totalorder %s44, 0
      %p271 = por %p269, %p270
      %p272 = scmp.ne.s32.totalorder %s260, %s261
      %p273 = scmp.eq.s32.totalorder %s45, 1
      %p274 = por %p272, %p273
      %p276 = scmp.ne.s32.totalorder %s261, %s275
      %p277 = scmp.eq.s32.totalorder %s45, 0
      %p278 = por %p276, %p277
      %s280 = sadd.s32 %s279, 1
      %p283 = scmp.eq.s32.totalorder %s39, 1
      %p284 = scmp.ne.s32.totalorder %s279, %s281
      %p285 = scmp.eq.s32.totalorder %s39, 0
      %p286 = por %p284, %p285
      %p287 = scmp.ne.s32.totalorder %s279, %s281
      %p288 = scmp.eq.s32.totalorder %s44, 1
      %p289 = por %p287, %p288
      %p290 = scmp.ne.s32.totalorder %s281, %s282
      %p291 = scmp.eq.s32.totalorder %s44, 0
      %p292 = por %p290, %p291
      %p293 = scmp.ne.s32.totalorder %s281, %s282
      %p294 = scmp.eq.s32.totalorder %s45, 1
      %p295 = por %p293, %p294
      %p297 = scmp.ne.s32.totalorder %s282, %s296
      %p298 = scmp.eq.s32.totalorder %s45, 0
      %p299 = por %p297, %p298
      %s301 = sadd.s32 %s300, 1
      %p304 = scmp.eq.s32.totalorder %s39, 1
      %p305 = scmp.ne.s32.totalorder %s300, %s302
      %p306 = scmp.eq.s32.totalorder %s39, 0
      %p307 = por %p305, %p306
      %p308 = scmp.ne.s32.totalorder %s300, %s302
      %p309 = scmp.eq.s32.totalorder %s44, 1
      %p310 = por %p308, %p309
      %p311 = scmp.ne.s32.totalorder %s302, %s303
      %p312 = scmp.eq.s32.totalorder %s44, 0
      %p313 = por %p311, %p312
      %p314 = scmp.ne.s32.totalorder %s302, %s303
      %p315 = scmp.eq.s32.totalorder %s45, 1
      %p316 = por %p314, %p315
      %p318 = scmp.ne.s32.totalorder %s303, %s317
      %p319 = scmp.eq.s32.totalorder %s45, 0
      %p320 = por %p318, %p319
      %s322 = sadd.s32 %s321, 1
      %p325 = scmp.eq.s32.totalorder %s39, 1
      %p326 = scmp.ne.s32.totalorder %s321, %s323
      %p327 = scmp.eq.s32.totalorder %s39, 0
      %p328 = por %p326, %p327
      %p329 = scmp.ne.s32.totalorder %s321, %s323
      %p330 = scmp.eq.s32.totalorder %s44, 1
      %p331 = por %p329, %p330
      %p332 = scmp.ne.s32.totalorder %s323, %s324
      %p333 = scmp.eq.s32.totalorder %s44, 0
      %p334 = por %p332, %p333
      %p335 = scmp.ne.s32.totalorder %s323, %s324
      %p336 = scmp.eq.s32.totalorder %s45, 1
      %p337 = por %p335, %p336
      %p339 = scmp.ne.s32.totalorder %s324, %s338
      %p340 = scmp.eq.s32.totalorder %s45, 0
      %p341 = por %p339, %p340
      %s343 = sadd.s32 %s342, 1
      %p346 = scmp.eq.s32.totalorder %s39, 1
      %p347 = scmp.ne.s32.totalorder %s342, %s344
      %p348 = scmp.eq.s32.totalorder %s39, 0
      %p349 = por %p347, %p348
      %p350 = scmp.ne.s32.totalorder %s342, %s344
      %p351 = scmp.eq.s32.totalorder %s44, 1
      %p352 = por %p350, %p351
      %p353 = scmp.ne.s32.totalorder %s344, %s345
      %p354 = scmp.eq.s32.totalorder %s44, 0
      %p355 = por %p353, %p354
      %p356 = scmp.ne.s32.totalorder %s344, %s345
      %p357 = scmp.eq.s32.totalorder %s45, 1
      %p358 = por %p356, %p357
      %p360 = scmp.ne.s32.totalorder %s345, %s359
      %p361 = scmp.eq.s32.totalorder %s45, 0
      %p362 = por %p360, %p361
      %s364 = sadd.s32 %s363, 1
      %p367 = scmp.eq.s32.totalorder %s39, 1
      %p368 = scmp.ne.s32.totalorder %s363, %s365
      %p369 = scmp.eq.s32.totalorder %s39, 0
      %p370 = por %p368, %p369
      %p371 = scmp.ne.s32.totalorder %s363, %s365
      %p372 = scmp.eq.s32.totalorder %s44, 1
      %p373 = por %p371, %p372
      %p374 = scmp.ne.s32.totalorder %s365, %s366
      %p375 = scmp.eq.s32.totalorder %s44, 0
      %p376 = por %p374, %p375
      %p377 = scmp.ne.s32.totalorder %s365, %s366
      %p378 = scmp.eq.s32.totalorder %s45, 1
      %p379 = por %p377, %p378
      %p381 = scmp.ne.s32.totalorder %s366, %s380
      %p382 = scmp.eq.s32.totalorder %s45, 0
      %p383 = por %p381, %p382
      %s385 = sadd.s32 %s384, 1
      %p388 = scmp.eq.s32.totalorder %s39, 1
      %p389 = scmp.ne.s32.totalorder %s384, %s386
      %p390 = scmp.eq.s32.totalorder %s39, 0
      %p391 = por %p389, %p390
      %p392 = scmp.ne.s32.totalorder %s384, %s386
      %p393 = scmp.eq.s32.totalorder %s44, 1
      %p394 = por %p392, %p393
      %p395 = scmp.ne.s32.totalorder %s386, %s387
      %p396 = scmp.eq.s32.totalorder %s44, 0
      %p397 = por %p395, %p396
      %p398 = scmp.ne.s32.totalorder %s386, %s387
      %p399 = scmp.eq.s32.totalorder %s45, 1
      %p400 = por %p398, %p399
      %p402 = scmp.ne.s32.totalorder %s387, %s401
      %p403 = scmp.eq.s32.totalorder %s45, 0
      %p404 = por %p402, %p403
      %s406 = sadd.s32 %s405, 1
      %p409 = scmp.eq.s32.totalorder %s39, 1
      %p410 = scmp.ne.s32.totalorder %s405, %s407
      %p411 = scmp.eq.s32.totalorder %s39, 0
      %p412 = por %p410, %p411
      %p413 = scmp.ne.s32.totalorder %s405, %s407
      %p414 = scmp.eq.s32.totalorder %s44, 1
      %p415 = por %p413, %p414
      %p416 = scmp.ne.s32.totalorder %s407, %s408
      %p417 = scmp.eq.s32.totalorder %s44, 0
      %p418 = por %p416, %p417
      %p419 = scmp.ne.s32.totalorder %s407, %s408
      %p420 = scmp.eq.s32.totalorder %s45, 1
      %p421 = por %p419, %p420
      %p423 = scmp.ne.s32.totalorder %s408, %s422
      %p424 = scmp.eq.s32.totalorder %s45, 0
      %p425 = por %p423, %p424
      %s427 = sadd.s32 %s426, 1
      %p430 = scmp.eq.s32.totalorder %s39, 1
      %p431 = scmp.ne.s32.totalorder %s426, %s428
      %p432 = scmp.eq.s32.totalorder %s39, 0
      %p433 = por %p431, %p432
      %p434 = scmp.ne.s32.totalorder %s426, %s428
      %p435 = scmp.eq.s32.totalorder %s44, 1
      %p436 = por %p434, %p435
      %p437 = scmp.ne.s32.totalorder %s428, %s429
      %p438 = scmp.eq.s32.totalorder %s44, 0
      %p439 = por %p437, %p438
      %p440 = scmp.ne.s32.totalorder %s428, %s429
      %p441 = scmp.eq.s32.totalorder %s45, 1
      %p442 = por %p440, %p441
      %p444 = scmp.ne.s32.totalorder %s429, %s443
      %p445 = scmp.eq.s32.totalorder %s45, 0
      %p446 = por %p444, %p445
      %s448 = sadd.s32 %s447, 1
      %p451 = scmp.eq.s32.totalorder %s39, 1
      %p452 = scmp.ne.s32.totalorder %s447, %s449
      %p453 = scmp.eq.s32.totalorder %s39, 0
      %p454 = por %p452, %p453
      %p455 = scmp.ne.s32.totalorder %s447, %s449
      %p456 = scmp.eq.s32.totalorder %s44, 1
      %p457 = por %p455, %p456
      %p458 = scmp.ne.s32.totalorder %s449, %s450
      %p459 = scmp.eq.s32.totalorder %s44, 0
      %p460 = por %p458, %p459
      %p461 = scmp.ne.s32.totalorder %s449, %s450
      %p462 = scmp.eq.s32.totalorder %s45, 1
      %p463 = por %p461, %p462
      %p465 = scmp.ne.s32.totalorder %s450, %s464
      %p466 = scmp.eq.s32.totalorder %s45, 0
      %p467 = por %p465, %p466
      %s469 = sadd.s32 %s468, 1
      %p472 = scmp.eq.s32.totalorder %s39, 1
      %p473 = scmp.ne.s32.totalorder %s468, %s470
      %p474 = scmp.eq.s32.totalorder %s39, 0
      %p475 = por %p473, %p474
      %p476 = scmp.ne.s32.totalorder %s468, %s470
      %p477 = scmp.eq.s32.totalorder %s44, 1
      %p478 = por %p476, %p477
      %p479 = scmp.ne.s32.totalorder %s470, %s471
      %p480 = scmp.eq.s32.totalorder %s44, 0
      %p481 = por %p479, %p480
      %p482 = scmp.ne.s32.totalorder %s470, %s471
      %p483 = scmp.eq.s32.totalorder %s45, 1
      %p484 = por %p482, %p483
      %p486 = scmp.ne.s32.totalorder %s471, %s485
      %p487 = scmp.eq.s32.totalorder %s45, 0
      %p488 = por %p486, %p487
      %s490 = sadd.s32 %s489, 1
      %p493 = scmp.eq.s32.totalorder %s39, 1
      %p494 = scmp.ne.s32.totalorder %s489, %s491
      %p495 = scmp.eq.s32.totalorder %s39, 0
      %p496 = por %p494, %p495
      %p497 = scmp.ne.s32.totalorder %s489, %s491
      %p498 = scmp.eq.s32.totalorder %s44, 1
      %p499 = por %p497, %p498
      %p500 = scmp.ne.s32.totalorder %s491, %s492
      %p501 = scmp.eq.s32.totalorder %s44, 0
      %p502 = por %p500, %p501
      %p503 = scmp.ne.s32.totalorder %s491, %s492
      %p504 = scmp.eq.s32.totalorder %s45, 1
      %p505 = por %p503, %p504
      %p507 = scmp.ne.s32.totalorder %s492, %s506
      %p508 = scmp.eq.s32.totalorder %s45, 0
      %p509 = por %p507, %p508
      %s511 = sadd.s32 %s510, 1
      %p514 = scmp.eq.s32.totalorder %s39, 1
      %p515 = scmp.ne.s32.totalorder %s510, %s512
      %p516 = scmp.eq.s32.totalorder %s39, 0
      %p517 = por %p515, %p516
      %p518 = scmp.ne.s32.totalorder %s510, %s512
      %p519 = scmp.eq.s32.totalorder %s44, 1
      %p520 = por %p518, %p519
      %p521 = scmp.ne.s32.totalorder %s512, %s513
      %p522 = scmp.eq.s32.totalorder %s44, 0
      %p523 = por %p521, %p522
      %p524 = scmp.ne.s32.totalorder %s512, %s513
      %p525 = scmp.eq.s32.totalorder %s45, 1
      %p526 = por %p524, %p525
      %p528 = scmp.ne.s32.totalorder %s513, %s527
      %p529 = scmp.eq.s32.totalorder %s45, 0
      %p530 = por %p528, %p529
      %s531 = ssub.s32 %s46, %s58
      %s532 = ssub.s32 %s47, %s54
      %s533 = sor.u32 %s531, %s532
      %p534 = scmp.eq.s32.totalorder %s533, 0
      %s536 = sadd.s32 %s535, 1
      %s537 = scalar_select %p534, %s535, %s536
      %p540 = pneg %p534
      %p541 = scmp.eq.s32.totalorder %s39, 1
      %p542 = por %p540, %p541
      %p543 = scmp.ne.s32.totalorder %s535, %s538
      %p544 = scmp.eq.s32.totalorder %s39, 0
      %p545 = por %p543, %p544
      %p546 = scmp.ne.s32.totalorder %s535, %s538
      %p547 = scmp.eq.s32.totalorder %s44, 1
      %p548 = por %p546, %p547
      %p549 = scmp.ne.s32.totalorder %s538, %s539
      %p550 = scmp.eq.s32.totalorder %s44, 0
      %p551 = por %p549, %p550
      %p552 = scmp.ne.s32.totalorder %s538, %s539
      %p553 = scmp.eq.s32.totalorder %s45, 1
      %p554 = por %p552, %p553
      %p556 = scmp.ne.s32.totalorder %s539, %s555
      %p557 = scmp.eq.s32.totalorder %s45, 0
      %p558 = por %p556, %p557
      %p559 = scmp.le.s32.totalorder 1, %s39
      %p560 = scmp.lt.s32.totalorder %s39, 3
      %p561 = pnand %p559, %p560
      %p562 = pneg %p561
      // Predicated region
      $region9: #{tpu_custom_call.1} parent=5 // pred_check
        _
      $region10: #{tpu_custom_call.1} parent=5 // pred_check_branch
        %564 = sbr.rel (%p561) target = $region12
      $region11: #{tpu_custom_call.1} parent=5 // pred_region
        %s565 = ssub.s32 %s39, 1
        // Predicated region
        $region13: #{tpu_custom_call.1} parent=11 // pred_check
          %p566 = pneg %p124
        $region14: #{tpu_custom_call.1} parent=11 // pred_check_branch
          %568 = sbr.rel (%p566) target = $region16
        $region15: #{tpu_custom_call.1} parent=11 // pred_region
          _
        $region16: #{tpu_custom_call.1} parent=11 // pred_fallthru
          _
        // Predicated region
        $region17: #{tpu_custom_call.1} parent=11 // pred_check
          %p569 = pneg %p145
        $region18: #{tpu_custom_call.1} parent=11 // pred_check_branch
          %571 = sbr.rel (%p569) target = $region20
        $region19: #{tpu_custom_call.1} parent=11 // pred_region
          _
        $region20: #{tpu_custom_call.1} parent=11 // pred_fallthru
          _
        // Predicated region
        $region21: #{tpu_custom_call.1} parent=11 // pred_check
          %p572 = pneg %p166
        $region22: #{tpu_custom_call.1} parent=11 // pred_check_branch
          %574 = sbr.rel (%p572) target = $region24
        $region23: #{tpu_custom_call.1} parent=11 // pred_region
          %576 = vsyncadd [#allocation3], 0
          %s577 = sshll.u32 %s4, 4
          %s578 = int_to_ptr.hbm [resolvable:$true] %s577
          %s579 = sshll.u32 [#allocation2], 4
          %s580 = int_to_ptr.vmem [resolvable:$true] %s579
          %585 = dma.hbm_to_vmem [thread:$0]  %s578, 256, %s580, [#allocation3], 64, 64, 4
        $region24: #{tpu_custom_call.1} parent=11 // pred_fallthru
          _
        // Predicated region
        $region25: #{tpu_custom_call.1} parent=11 // pred_check
          %p586 = pneg %p187
        $region26: #{tpu_custom_call.1} parent=11 // pred_check_branch
          %588 = sbr.rel (%p586) target = $region28
        $region27: #{tpu_custom_call.1} parent=11 // pred_region
          _
        $region28: #{tpu_custom_call.1} parent=11 // pred_fallthru
          _
        // Predicated region
        $region29: #{tpu_custom_call.1} parent=11 // pred_check
          %p589 = pneg %p208
        $region30: #{tpu_custom_call.1} parent=11 // pred_check_branch
          %591 = sbr.rel (%p589) target = $region32
        $region31: #{tpu_custom_call.1} parent=11 // pred_region
          %593 = vsyncadd [#allocation6], 0
          %s594 = sshll.u32 %s6, 4
          %s595 = int_to_ptr.hbm [resolvable:$true] %s594
          %s596 = sshll.u32 [#allocation5], 4
          %s597 = int_to_ptr.vmem [resolvable:$true] %s596
          %602 = dma.hbm_to_vmem [thread:$0]  %s595, 256, %s597, [#allocation6], 64, 64, 4
        $region32: #{tpu_custom_call.1} parent=11 // pred_fallthru
          _
        // Predicated region
        $region33: #{tpu_custom_call.1} parent=11 // pred_check
          %p603 = pneg %p229
        $region34: #{tpu_custom_call.1} parent=11 // pred_check_branch
          %605 = sbr.rel (%p603) target = $region36
        $region35: #{tpu_custom_call.1} parent=11 // pred_region
          _
        $region36: #{tpu_custom_call.1} parent=11 // pred_fallthru
          _
        // Predicated region
        $region37: #{tpu_custom_call.1} parent=11 // pred_check
          %p606 = pneg %p250
        $region38: #{tpu_custom_call.1} parent=11 // pred_check_branch
          %608 = sbr.rel (%p606) target = $region40
        $region39: #{tpu_custom_call.1} parent=11 // pred_region
          %610 = vsyncadd [#allocation6], 0
          %s611 = sshll.u32 %s8, 4
          %s612 = int_to_ptr.hbm [resolvable:$true] %s611
          %s613 = sshll.u32 [#allocation7], 4
          %s614 = int_to_ptr.vmem [resolvable:$true] %s613
          %619 = dma.hbm_to_vmem [thread:$0]  %s612, 256, %s614, [#allocation6], 64, 64, 4
        $region40: #{tpu_custom_call.1} parent=11 // pred_fallthru
          _
        // Predicated region
        $region41: #{tpu_custom_call.1} parent=11 // pred_check
          %p620 = pneg %p271
        $region42: #{tpu_custom_call.1} parent=11 // pred_check_branch
          %622 = sbr.rel (%p620) target = $region44
        $region43: #{tpu_custom_call.1} parent=11 // pred_region
          %624 = vsyncadd [#allocation9], 0
          %s626 = sshll.u32 %s9, 4
          %s627 = int_to_ptr.hbm [resolvable:$true] %s626
          %s628 = sshll.u32 [#allocation8], 4
          %s629 = int_to_ptr.vmem [resolvable:$true] %s628
          %631 = dma.hbm_to_vmem [thread:$0]  %s627, 16, %s629, [#allocation9]
        $region44: #{tpu_custom_call.1} parent=11 // pred_fallthru
          _
        // Predicated region
        $region45: #{tpu_custom_call.1} parent=11 // pred_check
          %p632 = pneg %p292
        $region46: #{tpu_custom_call.1} parent=11 // pred_check_branch
          %634 = sbr.rel (%p632) target = $region48
        $region47: #{tpu_custom_call.1} parent=11 // pred_region
          %636 = vsyncadd [#allocation9], 0
          %s637 = sshll.u32 %s10, 4
          %s638 = int_to_ptr.hbm [resolvable:$true] %s637
          %s639 = sshll.u32 [#allocation10], 4
          %s640 = int_to_ptr.vmem [resolvable:$true] %s639
          %645 = dma.hbm_to_vmem [thread:$0]  %s638, 256, %s640, [#allocation9], 64, 64, 4
        $region48: #{tpu_custom_call.1} parent=11 // pred_fallthru
          _
        // Predicated region
        $region49: #{tpu_custom_call.1} parent=11 // pred_check
          %p646 = pneg %p313
        $region50: #{tpu_custom_call.1} parent=11 // pred_check_branch
          %648 = sbr.rel (%p646) target = $region52
        $region51: #{tpu_custom_call.1} parent=11 // pred_region
          %650 = vsyncadd [#allocation12], 0
          %s652 = sshll.u32 %s11, 4
          %s653 = int_to_ptr.hbm [resolvable:$true] %s652
          %s654 = sshll.u32 [#allocation11], 4
          %s655 = int_to_ptr.vmem [resolvable:$true] %s654
          %657 = dma.hbm_to_vmem [thread:$0]  %s653, 16, %s655, [#allocation12]
        $region52: #{tpu_custom_call.1} parent=11 // pred_fallthru
          _
        // Predicated region
        $region53: #{tpu_custom_call.1} parent=11 // pred_check
          %p658 = pneg %p334
        $region54: #{tpu_custom_call.1} parent=11 // pred_check_branch
          %660 = sbr.rel (%p658) target = $region56
        $region55: #{tpu_custom_call.1} parent=11 // pred_region
          %662 = vsyncadd [#allocation12], 0
          %s663 = sshll.u32 %s12, 4
          %s664 = int_to_ptr.hbm [resolvable:$true] %s663
          %s665 = sshll.u32 [#allocation13], 4
          %s666 = int_to_ptr.vmem [resolvable:$true] %s665
          %671 = dma.hbm_to_vmem [thread:$0]  %s664, 256, %s666, [#allocation12], 64, 64, 4
        $region56: #{tpu_custom_call.1} parent=11 // pred_fallthru
          _
        // Predicated region
        $region57: #{tpu_custom_call.1} parent=11 // pred_check
          %p672 = pneg %p355
        $region58: #{tpu_custom_call.1} parent=11 // pred_check_branch
          %674 = sbr.rel (%p672) target = $region60
        $region59: #{tpu_custom_call.1} parent=11 // pred_region
          %676 = vsyncadd [#allocation15], 0
          %s678 = sshll.u32 %s13, 4
          %s679 = int_to_ptr.hbm [resolvable:$true] %s678
          %s680 = sshll.u32 [#allocation14], 4
          %s681 = int_to_ptr.vmem [resolvable:$true] %s680
          %683 = dma.hbm_to_vmem [thread:$0]  %s679, 16, %s681, [#allocation15]
        $region60: #{tpu_custom_call.1} parent=11 // pred_fallthru
          _
        // Predicated region
        $region61: #{tpu_custom_call.1} parent=11 // pred_check
          %p684 = pneg %p376
        $region62: #{tpu_custom_call.1} parent=11 // pred_check_branch
          %686 = sbr.rel (%p684) target = $region64
        $region63: #{tpu_custom_call.1} parent=11 // pred_region
          %688 = vsyncadd [#allocation15], 0
          %s690 = sshll.u32 %s14, 4
          %s691 = int_to_ptr.hbm [resolvable:$true] %s690
          %s692 = sshll.u32 [#allocation16], 4
          %s693 = int_to_ptr.vmem [resolvable:$true] %s692
          %695 = dma.hbm_to_vmem [thread:$0]  %s691, 16, %s693, [#allocation15]
        $region64: #{tpu_custom_call.1} parent=11 // pred_fallthru
          _
        // Predicated region
        $region65: #{tpu_custom_call.1} parent=11 // pred_check
          %p696 = pneg %p397
        $region66: #{tpu_custom_call.1} parent=11 // pred_check_branch
          %698 = sbr.rel (%p696) target = $region68
        $region67: #{tpu_custom_call.1} parent=11 // pred_region
          %700 = vsyncadd [#allocation18], 0
          %s702 = sshll.u32 %s15, 4
          %s703 = int_to_ptr.hbm [resolvable:$true] %s702
          %s704 = sshll.u32 [#allocation17], 4
          %s705 = int_to_ptr.vmem [resolvable:$true] %s704
          %707 = dma.hbm_to_vmem [thread:$0]  %s703, 16, %s705, [#allocation18]
        $region68: #{tpu_custom_call.1} parent=11 // pred_fallthru
          _
        // Predicated region
        $region69: #{tpu_custom_call.1} parent=11 // pred_check
          %p708 = pneg %p418
        $region70: #{tpu_custom_call.1} parent=11 // pred_check_branch
          %710 = sbr.rel (%p708) target = $region72
        $region71: #{tpu_custom_call.1} parent=11 // pred_region
          %712 = vsyncadd [#allocation18], 0
          %s714 = sshll.u32 %s16, 4
          %s715 = int_to_ptr.hbm [resolvable:$true] %s714
          %s716 = sshll.u32 [#allocation19], 4
          %s717 = int_to_ptr.vmem [resolvable:$true] %s716
          %719 = dma.hbm_to_vmem [thread:$0]  %s715, 16, %s717, [#allocation18]
        $region72: #{tpu_custom_call.1} parent=11 // pred_fallthru
          _
        // Predicated region
        $region73: #{tpu_custom_call.1} parent=11 // pred_check
          %p720 = pneg %p439
        $region74: #{tpu_custom_call.1} parent=11 // pred_check_branch
          %722 = sbr.rel (%p720) target = $region76
        $region75: #{tpu_custom_call.1} parent=11 // pred_region
          %724 = vsyncadd [#allocation21], 0
          %s726 = sshll.u32 %s17, 4
          %s727 = int_to_ptr.hbm [resolvable:$true] %s726
          %s728 = sshll.u32 [#allocation20], 4
          %s729 = int_to_ptr.vmem [resolvable:$true] %s728
          %731 = dma.hbm_to_vmem [thread:$0]  %s727, 16, %s729, [#allocation21]
        $region76: #{tpu_custom_call.1} parent=11 // pred_fallthru
          _
        // Predicated region
        $region77: #{tpu_custom_call.1} parent=11 // pred_check
          %p732 = pneg %p460
        $region78: #{tpu_custom_call.1} parent=11 // pred_check_branch
          %734 = sbr.rel (%p732) target = $region80
        $region79: #{tpu_custom_call.1} parent=11 // pred_region
          %736 = vsyncadd [#allocation21], 0
          %s737 = sshll.u32 %s18, 4
          %s738 = int_to_ptr.hbm [resolvable:$true] %s737
          %s739 = sshll.u32 [#allocation22], 4
          %s740 = int_to_ptr.vmem [resolvable:$true] %s739
          %745 = dma.hbm_to_vmem [thread:$0]  %s738, 256, %s740, [#allocation21], 64, 64, 4
        $region80: #{tpu_custom_call.1} parent=11 // pred_fallthru
          _
        // Predicated region
        $region81: #{tpu_custom_call.1} parent=11 // pred_check
          %p746 = pneg %p481
        $region82: #{tpu_custom_call.1} parent=11 // pred_check_branch
          %748 = sbr.rel (%p746) target = $region84
        $region83: #{tpu_custom_call.1} parent=11 // pred_region
          %750 = vsyncadd [#allocation24], 0
          %s752 = sshll.u32 %s19, 4
          %s753 = int_to_ptr.hbm [resolvable:$true] %s752
          %s754 = sshll.u32 [#allocation23], 4
          %s755 = int_to_ptr.vmem [resolvable:$true] %s754
          %757 = dma.hbm_to_vmem [thread:$0]  %s753, 16, %s755, [#allocation24]
        $region84: #{tpu_custom_call.1} parent=11 // pred_fallthru
          _
        // Predicated region
        $region85: #{tpu_custom_call.1} parent=11 // pred_check
          %p758 = pneg %p502
        $region86: #{tpu_custom_call.1} parent=11 // pred_check_branch
          %760 = sbr.rel (%p758) target = $region88
        $region87: #{tpu_custom_call.1} parent=11 // pred_region
          _
        $region88: #{tpu_custom_call.1} parent=11 // pred_fallthru
          _
        // Predicated region
        $region89: #{tpu_custom_call.1} parent=11 // pred_check
          %p761 = pneg %p523
        $region90: #{tpu_custom_call.1} parent=11 // pred_check_branch
          %763 = sbr.rel (%p761) target = $region92
        $region91: #{tpu_custom_call.1} parent=11 // pred_region
          _
        $region92: #{tpu_custom_call.1} parent=11 // pred_fallthru
          _
      $region12: #{tpu_custom_call.1} parent=5 // pred_fallthru
        _
      %p764 = scmp.lt.s32.totalorder %s39, 2
      // Predicated region
      $region93: #{tpu_custom_call.1} parent=5 // pred_check
        %p765 = pneg %p764
      $region94: #{tpu_custom_call.1} parent=5 // pred_check_branch
        %767 = sbr.rel (%p765) target = $region96
      $region95: #{tpu_custom_call.1} parent=5 // pred_region
        // Predicated region
        $region97: #{tpu_custom_call.1} parent=95 // pred_check
          %p768 = pneg %p71
        $region98: #{tpu_custom_call.1} parent=95 // pred_check_branch
          %770 = sbr.rel (%p768) target = $region100
        $region99: #{tpu_custom_call.1} parent=95 // pred_region
          %p771 = scmp.lt.s32.totalorder %s46, 1
          %s772 = scalar_select %p771, %s46, 1
          %s773 = smul.addr %s772, 8
          %s774 = scalar_lea.vmem %s0, %s773
        $region100: #{tpu_custom_call.1} parent=95 // pred_fallthru
          _
        // Predicated region
        $region101: #{tpu_custom_call.1} parent=95 // pred_check
          %p775 = pneg %p97
        $region102: #{tpu_custom_call.1} parent=95 // pred_check_branch
          %777 = sbr.rel (%p775) target = $region104
        $region103: #{tpu_custom_call.1} parent=95 // pred_region
          %p778 = scmp.lt.s32.totalorder %s46, 1
          %s779 = scalar_select %p778, %s46, 1
          %s780 = smul.addr %s779, 8
          %s781 = scalar_lea.vmem %s1, %s780
        $region104: #{tpu_custom_call.1} parent=95 // pred_fallthru
          _
      $region96: #{tpu_custom_call.1} parent=5 // pred_fallthru
        _
      %p782 = scmp.le.s32.totalorder 1, %s39
      %p783 = scmp.lt.s32.totalorder %s39, 3
      %p784 = pnand %p782, %p783
      %p785 = pneg %p784
      // Predicated region
      $region105: #{tpu_custom_call.1} parent=5 // pred_check
        _
      $region106: #{tpu_custom_call.1} parent=5 // pred_check_branch
        %787 = sbr.rel (%p784) target = $region108
      $region107: #{tpu_custom_call.1} parent=5 // pred_region
        %s788 = ssub.s32 %s39, 1
        // Predicated region
        $region109: #{tpu_custom_call.1} parent=107 // pred_check
          %p789 = pneg %p166
        $region110: #{tpu_custom_call.1} parent=107 // pred_check_branch
          %791 = sbr.rel (%p789) target = $region112
        $region111: #{tpu_custom_call.1} parent=107 // pred_region
          %793 = dma.done [#allocation3], 256
        $region112: #{tpu_custom_call.1} parent=107 // pred_fallthru
          _
        // Predicated region
        $region113: #{tpu_custom_call.1} parent=107 // pred_check
          %p794 = pneg %p208
        $region114: #{tpu_custom_call.1} parent=107 // pred_check_branch
          %796 = sbr.rel (%p794) target = $region116
        $region115: #{tpu_custom_call.1} parent=107 // pred_region
          %798 = dma.done [#allocation6], 256
        $region116: #{tpu_custom_call.1} parent=107 // pred_fallthru
          _
        // Predicated region
        $region117: #{tpu_custom_call.1} parent=107 // pred_check
          %p799 = pneg %p250
        $region118: #{tpu_custom_call.1} parent=107 // pred_check_branch
          %801 = sbr.rel (%p799) target = $region120
        $region119: #{tpu_custom_call.1} parent=107 // pred_region
          %803 = dma.done [#allocation6], 256
        $region120: #{tpu_custom_call.1} parent=107 // pred_fallthru
          _
        // Predicated region
        $region121: #{tpu_custom_call.1} parent=107 // pred_check
          %p804 = pneg %p271
        $region122: #{tpu_custom_call.1} parent=107 // pred_check_branch
          %806 = sbr.rel (%p804) target = $region124
        $region123: #{tpu_custom_call.1} parent=107 // pred_region
          %808 = dma.done [#allocation9], 16
        $region124: #{tpu_custom_call.1} parent=107 // pred_fallthru
          _
        // Predicated region
        $region125: #{tpu_custom_call.1} parent=107 // pred_check
          %p809 = pneg %p292
        $region126: #{tpu_custom_call.1} parent=107 // pred_check_branch
          %811 = sbr.rel (%p809) target = $region128
        $region127: #{tpu_custom_call.1} parent=107 // pred_region
          %813 = dma.done [#allocation9], 256
        $region128: #{tpu_custom_call.1} parent=107 // pred_fallthru
          _
        // Predicated region
        $region129: #{tpu_custom_call.1} parent=107 // pred_check
          %p814 = pneg %p313
        $region130: #{tpu_custom_call.1} parent=107 // pred_check_branch
          %816 = sbr.rel (%p814) target = $region132
        $region131: #{tpu_custom_call.1} parent=107 // pred_region
          %818 = dma.done [#allocation12], 16
        $region132: #{tpu_custom_call.1} parent=107 // pred_fallthru
          _
        // Predicated region
        $region133: #{tpu_custom_call.1} parent=107 // pred_check
          %p819 = pneg %p334
        $region134: #{tpu_custom_call.1} parent=107 // pred_check_branch
          %821 = sbr.rel (%p819) target = $region136
        $region135: #{tpu_custom_call.1} parent=107 // pred_region
          %823 = dma.done [#allocation12], 256
        $region136: #{tpu_custom_call.1} parent=107 // pred_fallthru
          _
        // Predicated region
        $region137: #{tpu_custom_call.1} parent=107 // pred_check
          %p824 = pneg %p355
        $region138: #{tpu_custom_call.1} parent=107 // pred_check_branch
          %826 = sbr.rel (%p824) target = $region140
        $region139: #{tpu_custom_call.1} parent=107 // pred_region
          %828 = dma.done [#allocation15], 16
        $region140: #{tpu_custom_call.1} parent=107 // pred_fallthru
          _
        // Predicated region
        $region141: #{tpu_custom_call.1} parent=107 // pred_check
          %p829 = pneg %p376
        $region142: #{tpu_custom_call.1} parent=107 // pred_check_branch
          %831 = sbr.rel (%p829) target = $region144
        $region143: #{tpu_custom_call.1} parent=107 // pred_region
          %833 = dma.done [#allocation15], 16
        $region144: #{tpu_custom_call.1} parent=107 // pred_fallthru
          _
        // Predicated region
        $region145: #{tpu_custom_call.1} parent=107 // pred_check
          %p834 = pneg %p397
        $region146: #{tpu_custom_call.1} parent=107 // pred_check_branch
          %836 = sbr.rel (%p834) target = $region148
        $region147: #{tpu_custom_call.1} parent=107 // pred_region
          %838 = dma.done [#allocation18], 16
        $region148: #{tpu_custom_call.1} parent=107 // pred_fallthru
          _
        // Predicated region
        $region149: #{tpu_custom_call.1} parent=107 // pred_check
          %p839 = pneg %p418
        $region150: #{tpu_custom_call.1} parent=107 // pred_check_branch
          %841 = sbr.rel (%p839) target = $region152
        $region151: #{tpu_custom_call.1} parent=107 // pred_region
          %843 = dma.done [#allocation18], 16
        $region152: #{tpu_custom_call.1} parent=107 // pred_fallthru
          _
        // Predicated region
        $region153: #{tpu_custom_call.1} parent=107 // pred_check
          %p844 = pneg %p439
        $region154: #{tpu_custom_call.1} parent=107 // pred_check_branch
          %846 = sbr.rel (%p844) target = $region156
        $region155: #{tpu_custom_call.1} parent=107 // pred_region
          %848 = dma.done [#allocation21], 16
        $region156: #{tpu_custom_call.1} parent=107 // pred_fallthru
          _
        // Predicated region
        $region157: #{tpu_custom_call.1} parent=107 // pred_check
          %p849 = pneg %p460
        $region158: #{tpu_custom_call.1} parent=107 // pred_check_branch
          %851 = sbr.rel (%p849) target = $region160
        $region159: #{tpu_custom_call.1} parent=107 // pred_region
          %853 = dma.done [#allocation21], 256
        $region160: #{tpu_custom_call.1} parent=107 // pred_fallthru
          _
        // Predicated region
        $region161: #{tpu_custom_call.1} parent=107 // pred_check
          %p854 = pneg %p481
        $region162: #{tpu_custom_call.1} parent=107 // pred_check_branch
          %856 = sbr.rel (%p854) target = $region164
        $region163: #{tpu_custom_call.1} parent=107 // pred_region
          %858 = dma.done [#allocation24], 16
        $region164: #{tpu_custom_call.1} parent=107 // pred_fallthru
          _
        %p859 = scmp.lt.s32.totalorder %s48, 1
        %s860 = scalar_select %p859, %s48, 1
        %s861 = smul.addr %s860, 8
        %s862 = scalar_lea.vmem %s0, %s861
        %p863 = pneg %p77
        %p864 = pneg %p74
        %p865 = scmp.lt.s32.totalorder %s48, 1
        %s866 = scalar_select %p865, %s48, 1
        %s867 = smul.addr %s866, 8
        %s868 = scalar_lea.vmem %s1, %s867
        %p869 = pneg %p103
        %p870 = pneg %p100
        %p871 = pneg %p124
        %p872 = pneg %p121
        %p873 = pneg %p145
        %p874 = pneg %p142
        %p875 = pneg %p166
        %p876 = pneg %p163
        %p877 = pneg %p187
        %p878 = pneg %p184
        %p879 = pneg %p208
        %p880 = pneg %p205
        %p881 = pneg %p229
        %p882 = pneg %p226
        %p883 = pneg %p250
        %p884 = pneg %p247
        %p885 = pneg %p271
        %p886 = pneg %p268
        %p887 = pneg %p292
        %p888 = pneg %p289
        %p889 = pneg %p313
        %p890 = pneg %p310
        %p891 = pneg %p334
        %p892 = pneg %p331
        %p893 = pneg %p355
        %p894 = pneg %p352
        %p895 = pneg %p376
        %p896 = pneg %p373
        %p897 = pneg %p397
        %p898 = pneg %p394
        %p899 = pneg %p418
        %p900 = pneg %p415
        %p901 = pneg %p439
        %p902 = pneg %p436
        %p903 = pneg %p460
        %p904 = pneg %p457
        %p905 = pneg %p481
        %p906 = pneg %p478
        %p907 = pneg %p502
        %p908 = pneg %p499
        %p909 = pneg %p523
        %p910 = pneg %p520
        %p911 = pneg %p551
        %p912 = pneg %p548
        %s913 = sand.u32 %s538, 1
        %s914 = scalar_lea.sflag [#allocation4], %s913
        %s915 = sand.u32 %s538, 1
        %s916 = smul.addr %s915, 8
        %s917 = scalar_lea.vmem [#allocation25], %s916
        %p918 = scmp.lt.s32.totalorder %s48, 1
        %s919 = scalar_select %p918, %s48, 1
        %s920 = smul.addr %s919, 8
        %s921 = scalar_lea.vmem %s0, %s920
        %p922 = scmp.lt.s32.totalorder %s48, 1
        %s923 = scalar_select %p922, %s48, 1
        %s924 = smul.addr %s923, 8
        %s925 = scalar_lea.vmem %s1, %s924
        %s927 = smul.u32 %s49, 8
        %v928 = vld [vmem:[%s921] sm:$0xff]
        %v929 = vld [vmem:[%s925] sm:$0xff]
        %s930 = scalar_lea.vmem %s921, %s927
        %v931 = vld [vmem:[%s930] sm:$0xff]
        %v932 = vlaneseq
        %v933 = vshrl.u32 %v932, 7
        %v934 = vstv %s927
        %v935 = vadd.s32 %v934, %v933
        %v936 = vlaneseq
        %v937 = vand.u32 %v936, 127
        %vm938 = vcmp.gt.s32.totalorder %v937, %v935
        %v939 = vld [vmem:[%s2] sm:$0xf]
        %v940 = vld [vmem:[%s2 + $0x4] sm:$0xf]
        %v941 = vld [vmem:[%s2 + $0x8] sm:$0xf]
        %v942 = vld [vmem:[%s2 + $0xc] sm:$0xf]
        %v943 = vld [vmem:[%s3] sm:$0x1]
        %v944 = vld [vmem:[#allocation2] sm:$0xf]
        %v945 = vld [vmem:[#allocation2 + $0x4] sm:$0xf]
        %v946 = vld [vmem:[#allocation2 + $0x8] sm:$0xf]
        %v947 = vld [vmem:[#allocation2 + $0xc] sm:$0xf]
        %v948 = vld [vmem:[%s5] sm:$0x1]
        %v949 = vld [vmem:[#allocation5] sm:$0xf]
        %v950 = vld [vmem:[#allocation5 + $0x4] sm:$0xf]
        %v951 = vld [vmem:[#allocation5 + $0x8] sm:$0xf]
        %v952 = vld [vmem:[#allocation5 + $0xc] sm:$0xf]
        %v953 = vld [vmem:[%s7] sm:$0x1]
        %v954 = vpack.c.bf16 %v931, %v931
        %v956 = vperm.slane %v943, 0
        %v962 = vunpack.c.l.b16 %v939
        %v963 = vunpack.c.l.b16 %v940
        %v964 = vunpack.c.l.b16 %v941
        %v965 = vunpack.c.l.b16 %v942
        %v966 = vpack.c.b16 %v963, %v962
        %v967 = vpack.c.b16 %v965, %v964
        %vm970 = vcmask 261120
        %v972 = vsel %vm970, %v954, 0
        %974 = vmatpush.bf16.msra.mxu0 0
        %975 = vmatpush.bf16.msra.mxu0 0
        %976 = vmatpush.bf16.msra.mxu0 0
        %977 = vmatpush.bf16.msra.mxu0 0
        %978 = vmatpush.bf16.msra.mxu0 0
        %979 = vmatpush.bf16.msra.mxu0 0
        %980 = vmatpush.bf16.msra.mxu0 %v967
        %981 = vmatpush.bf16.msra.mxu0 %v966
        %982 = vmatmul.bf16.gmra.mxu0 %v972
        %v983 = vpop.f32.mrf.mxu0
        %v984 = vadd.f32 %v956, %v983
        %v985 = vpop.f32.mrf.mxu0
        %986 = vdwg.mxu0
        %v987 = vpack.c.bf16 %v928, %v928
        %v989 = vperm.slane %v948, 0
        %v995 = vunpack.c.l.b16 %v944
        %v996 = vunpack.c.l.b16 %v945
        %v997 = vunpack.c.l.b16 %v946
        %v998 = vunpack.c.l.b16 %v947
        %v999 = vpack.c.b16 %v996, %v995
        %v1000 = vpack.c.b16 %v998, %v997
        %v1004 = vsel %vm970, %v987, 0
        %1006 = vmatpush.bf16.msra.mxu0 0
        %1007 = vmatpush.bf16.msra.mxu0 0
        %1008 = vmatpush.bf16.msra.mxu0 0
        %1009 = vmatpush.bf16.msra.mxu0 0
        %1010 = vmatpush.bf16.msra.mxu0 0
        %1011 = vmatpush.bf16.msra.mxu0 0
        %1012 = vmatpush.bf16.msra.mxu0 %v1000
        %1013 = vmatpush.bf16.msra.mxu0 %v999
        %1014 = vmatmul.bf16.gmra.mxu0 %v1004
        %v1015 = vpop.f32.mrf.mxu0
        %v1016 = vadd.f32 %v989, %v1015
        %v1017 = vpop.f32.mrf.mxu0
        %1018 = vdwg.mxu0
        %1020 = vrot.lane.b32.xlu0 %v984, 120
        %v1021 = vpop.permute.xlu0 %1020
        %1023 = vrot.lane.b32.xlu0 %v984, 112
        %v1024 = vpop.permute.xlu0 %1023
        %1026 = vrot.lane.b32.xlu0 %v984, 104
        %v1027 = vpop.permute.xlu0 %1026
        %1030 = vrot.lane.b32.xlu0 %v1016, 120
        %v1031 = vpop.permute.xlu0 %1030
        %1033 = vrot.lane.b32.xlu0 %v1016, 112
        %v1034 = vpop.permute.xlu0 %1033
        %1036 = vrot.lane.b32.xlu0 %v1016, 104
        %v1037 = vpop.permute.xlu0 %1036
        %v1039 = vpack.c.bf16 %v984, %v984
        %v1040 = vpack.c.bf16 %v1021, %v1021
        %v1041 = vpack.c.bf16 %v1024, %v1024
        %v1042 = vpack.c.bf16 %v1027, %v1027
        %v1043 = vpack.c.bf16 %v1016, %v1016
        %v1044 = vpack.c.bf16 %v1031, %v1031
        %v1045 = vpack.c.bf16 %v1034, %v1034
        %v1046 = vpack.c.bf16 %v1037, %v1037
        %vm1047 = vcmask 64512
        %v1049 = vsel %vm1047, %v1039, 0
        %v1052 = vsel %vm1047, %v1043, 0
        %1054 = vmatpush.bf16.xpose.msra.mxu0 0
        %1055 = vmatpush.bf16.xpose.msra.mxu0 0
        %1056 = vmatpush.bf16.xpose.msra.mxu0 0
        %1057 = vmatpush.bf16.xpose.msra.mxu0 0
        %1058 = vmatpush.bf16.xpose.msra.mxu0 0
        %1059 = vmatpush.bf16.xpose.msra.mxu0 0
        %1060 = vmatpush.bf16.xpose.msra.mxu0 0
        %1061 = vmatpush.bf16.xpose.msra.mxu0 %v1052
        %1062 = vmatmul.bf16.gmra.mxu0 %v1049
        %v1063 = vpop.f32.mrf.mxu0
        %v1064 = vadd.f32 0.0, %v1063
        %v1065 = vpop.f32.mrf.mxu0
        %1066 = vdwg.mxu0
        %v1068 = vsel %vm1047, %v1040, 0
        %v1071 = vsel %vm1047, %v1044, 0
        %1073 = vmatpush.bf16.xpose.msra.mxu0 0
        %1074 = vmatpush.bf16.xpose.msra.mxu0 0
        %1075 = vmatpush.bf16.xpose.msra.mxu0 0
        %1076 = vmatpush.bf16.xpose.msra.mxu0 0
        %1077 = vmatpush.bf16.xpose.msra.mxu0 0
        %1078 = vmatpush.bf16.xpose.msra.mxu0 0
        %1079 = vmatpush.bf16.xpose.msra.mxu0 0
        %1080 = vmatpush.bf16.xpose.msra.mxu0 %v1071
        %1081 = vmatmul.bf16.gmra.mxu0 %v1068
        %v1082 = vpop.f32.mrf.mxu0
        %v1083 = vadd.f32 0.0, %v1082
        %v1084 = vpop.f32.mrf.mxu0
        %1085 = vdwg.mxu0
        %v1087 = vsel %vm1047, %v1041, 0
        %v1090 = vsel %vm1047, %v1045, 0
        %1092 = vmatpush.bf16.xpose.msra.mxu0 0
        %1093 = vmatpush.bf16.xpose.msra.mxu0 0
        %1094 = vmatpush.bf16.xpose.msra.mxu0 0
        %1095 = vmatpush.bf16.xpose.msra.mxu0 0
        %1096 = vmatpush.bf16.xpose.msra.mxu0 0
        %1097 = vmatpush.bf16.xpose.msra.mxu0 0
        %1098 = vmatpush.bf16.xpose.msra.mxu0 0
        %1099 = vmatpush.bf16.xpose.msra.mxu0 %v1090
        %1100 = vmatmul.bf16.gmra.mxu0 %v1087
        %v1101 = vpop.f32.mrf.mxu0
        %v1102 = vadd.f32 0.0, %v1101
        %v1103 = vpop.f32.mrf.mxu0
        %1104 = vdwg.mxu0
        %v1106 = vsel %vm1047, %v1042, 0
        %v1109 = vsel %vm1047, %v1046, 0
        %1111 = vmatpush.bf16.xpose.msra.mxu0 0
        %1112 = vmatpush.bf16.xpose.msra.mxu0 0
        %1113 = vmatpush.bf16.xpose.msra.mxu0 0
        %1114 = vmatpush.bf16.xpose.msra.mxu0 0
        %1115 = vmatpush.bf16.xpose.msra.mxu0 0
        %1116 = vmatpush.bf16.xpose.msra.mxu0 0
        %1117 = vmatpush.bf16.xpose.msra.mxu0 0
        %1118 = vmatpush.bf16.xpose.msra.mxu0 %v1109
        %1119 = vmatmul.bf16.gmra.mxu0 %v1106
        %v1120 = vpop.f32.mrf.mxu0
        %v1121 = vadd.f32 0.0, %v1120
        %v1122 = vpop.f32.mrf.mxu0
        %1123 = vdwg.mxu0
        %v1124 = vmul.f32 %v1064, 0.35355338
        %v1125 = vmul.f32 %v1083, 0.35355338
        %v1126 = vmul.f32 %v1102, 0.35355338
        %v1127 = vmul.f32 %v1121, 0.35355338
        %v1128 = vsel %vm938, 1, 0
        %vm1129 = vcmp.eq.s32.totalorder %v1128, 1
        %v1130 = vsel %vm1129, -1e+09, %v1124
        %v1131 = vsel %vm1129, -1e+09, %v1125
        %v1132 = vsel %vm1129, -1e+09, %v1126
        %v1133 = vsel %vm1129, -1e+09, %v1127
        %v1134 = vsel %vm1047, %v1130, -inf
        %1135 = vmax.xlane.f32.xlu0 %v1134
        %v1136 = vpop.xlane.xlu0 %1135
        %v1137 = vsel %vm1047, %v1131, -inf
        %1138 = vmax.xlane.f32.xlu0 %v1137
        %v1139 = vpop.xlane.xlu0 %1138
        %v1140 = vsel %vm1047, %v1132, -inf
        %1141 = vmax.xlane.f32.xlu0 %v1140
        %v1142 = vpop.xlane.xlu0 %1141
        %v1143 = vsel %vm1047, %v1133, -inf
        %1144 = vmax.xlane.f32.xlu0 %v1143
        %v1145 = vpop.xlane.xlu0 %1144
        %v1146 = vsub.f32 %v1130, %v1136
        %v1147 = vsub.f32 %v1131, %v1139
        %v1148 = vsub.f32 %v1132, %v1142
        %v1149 = vsub.f32 %v1133, %v1145
        %v1150 = vmul.f32 %v1146, 1.442695
        %v1151 = vpow.pop %v1150
        %v1152 = vmul.f32 %v1147, 1.442695
        %v1153 = vpow.pop %v1152
        %v1154 = vmul.f32 %v1148, 1.442695
        %v1155 = vpow.pop %v1154
        %v1156 = vmul.f32 %v1149, 1.442695
        %v1157 = vpow.pop %v1156
        %v1158 = vsel %vm1047, %v1151, 0.0
        %1159 = vadd.xlane.f32.xlu0 %v1158
        %v1160 = vpop.xlane.xlu0 %1159
        %v1161 = vsel %vm1047, %v1153, 0.0
        %1162 = vadd.xlane.f32.xlu0 %v1161
        %v1163 = vpop.xlane.xlu0 %1162
        %v1164 = vsel %vm1047, %v1155, 0.0
        %1165 = vadd.xlane.f32.xlu0 %v1164
        %v1166 = vpop.xlane.xlu0 %1165
        %v1167 = vsel %vm1047, %v1157, 0.0
        %1168 = vadd.xlane.f32.xlu0 %v1167
        %v1169 = vpop.xlane.xlu0 %1168
        %v1170 = vrcp.pop %v1160
        %v1171 = vrcp.pop %v1163
        %v1172 = vrcp.pop %v1166
        %v1173 = vrcp.pop %v1169
        %v1174 = vmul.f32 %v1151, %v1170
        %v1175 = vmul.f32 %v1153, %v1171
        %v1176 = vmul.f32 %v1155, %v1172
        %v1177 = vmul.f32 %v1157, %v1173
        %v1178 = vpack.c.bf16 %v1174, %v1174
        %v1179 = vpack.c.bf16 %v1175, %v1175
        %v1180 = vpack.c.bf16 %v1176, %v1176
        %v1181 = vpack.c.bf16 %v1177, %v1177
        %v1183 = vunpack.c.l.b16 %v1043
        %v1184 = vpack.c.b16 %v1183, %v1183
        %1185 = vrot.lane.b32.xlu0 %v1184, 96
        %v1186 = vpop.permute.xlu0 %1185
        %v1188 = vsel %vm1047, %v1178, 0
        %vm1190 = vcmask 1043456
        %v1192 = vsel %vm1190, %v1186, 0
        %1194 = vmatpush.bf16.msra.mxu0 0
        %1195 = vmatpush.bf16.msra.mxu0 0
        %1196 = vmatpush.bf16.msra.mxu0 0
        %1197 = vmatpush.bf16.msra.mxu0 0
        %1198 = vmatpush.bf16.msra.mxu0 0
        %1199 = vmatpush.bf16.msra.mxu0 0
        %1200 = vmatpush.bf16.msra.mxu0 0
        %1201 = vmatpush.bf16.msra.mxu0 %v1192
        %1202 = vmatmul.bf16.gmra.mxu0 %v1188
        %v1203 = vpop.f32.mrf.mxu0
        %v1204 = vadd.f32 0.0, %v1203
        %v1205 = vpop.f32.mrf.mxu0
        %1206 = vdwg.mxu0
        %v1208 = vunpack.c.l.b16 %v1044
        %v1209 = vpack.c.b16 %v1208, %v1208
        %1210 = vrot.lane.b32.xlu0 %v1209, 96
        %v1211 = vpop.permute.xlu0 %1210
        %v1213 = vsel %vm1047, %v1179, 0
        %v1216 = vsel %vm1190, %v1211, 0
        %1218 = vmatpush.bf16.msra.mxu0 0
        %1219 = vmatpush.bf16.msra.mxu0 0
        %1220 = vmatpush.bf16.msra.mxu0 0
        %1221 = vmatpush.bf16.msra.mxu0 0
        %1222 = vmatpush.bf16.msra.mxu0 0
        %1223 = vmatpush.bf16.msra.mxu0 0
        %1224 = vmatpush.bf16.msra.mxu0 0
        %1225 = vmatpush.bf16.msra.mxu0 %v1216
        %1226 = vmatmul.bf16.gmra.mxu0 %v1213
        %v1227 = vpop.f32.mrf.mxu0
        %v1228 = vadd.f32 0.0, %v1227
        %v1229 = vpop.f32.mrf.mxu0
        %1230 = vdwg.mxu0
        %v1232 = vunpack.c.l.b16 %v1045
        %v1233 = vpack.c.b16 %v1232, %v1232
        %1234 = vrot.lane.b32.xlu0 %v1233, 96
        %v1235 = vpop.permute.xlu0 %1234
        %v1237 = vsel %vm1047, %v1180, 0
        %v1240 = vsel %vm1190, %v1235, 0
        %1242 = vmatpush.bf16.msra.mxu0 0
        %1243 = vmatpush.bf16.msra.mxu0 0
        %1244 = vmatpush.bf16.msra.mxu0 0
        %1245 = vmatpush.bf16.msra.mxu0 0
        %1246 = vmatpush.bf16.msra.mxu0 0
        %1247 = vmatpush.bf16.msra.mxu0 0
        %1248 = vmatpush.bf16.msra.mxu0 0
        %1249 = vmatpush.bf16.msra.mxu0 %v1240
        %1250 = vmatmul.bf16.gmra.mxu0 %v1237
        %v1251 = vpop.f32.mrf.mxu0
        %v1252 = vadd.f32 0.0, %v1251
        %v1253 = vpop.f32.mrf.mxu0
        %1254 = vdwg.mxu0
        %v1256 = vunpack.c.l.b16 %v1046
        %v1257 = vpack.c.b16 %v1256, %v1256
        %1258 = vrot.lane.b32.xlu0 %v1257, 96
        %v1259 = vpop.permute.xlu0 %1258
        %v1261 = vsel %vm1047, %v1181, 0
        %v1264 = vsel %vm1190, %v1259, 0
        %1266 = vmatpush.bf16.msra.mxu0 0
        %1267 = vmatpush.bf16.msra.mxu0 0
        %1268 = vmatpush.bf16.msra.mxu0 0
        %1269 = vmatpush.bf16.msra.mxu0 0
        %1270 = vmatpush.bf16.msra.mxu0 0
        %1271 = vmatpush.bf16.msra.mxu0 0
        %1272 = vmatpush.bf16.msra.mxu0 0
        %1273 = vmatpush.bf16.msra.mxu0 %v1264
        %1274 = vmatmul.bf16.gmra.mxu0 %v1261
        %v1275 = vpop.f32.mrf.mxu0
        %v1276 = vadd.f32 0.0, %v1275
        %v1277 = vpop.f32.mrf.mxu0
        %1278 = vdwg.mxu0
        %v1279 = vpack.c.bf16 %v1204, %v1204
        %v1280 = vpack.c.bf16 %v1228, %v1228
        %v1281 = vpack.c.bf16 %v1252, %v1252
        %v1282 = vpack.c.bf16 %v1276, %v1276
        %v1284 = vsel %vm1047, %v1279, 0
        %v1287 = vsel %vm1190, %v949, 0
        %1289 = vmatpush.bf16.msra.mxu0 0
        %1290 = vmatpush.bf16.msra.mxu0 0
        %1291 = vmatpush.bf16.msra.mxu0 0
        %1292 = vmatpush.bf16.msra.mxu0 0
        %1293 = vmatpush.bf16.msra.mxu0 0
        %1294 = vmatpush.bf16.msra.mxu0 0
        %1295 = vmatpush.bf16.msra.mxu0 0
        %1296 = vmatpush.bf16.msra.mxu0 %v1287
        %1297 = vmatmul.bf16.gmra.mxu0 %v1284
        %v1298 = vpop.f32.mrf.mxu0
        %v1299 = vadd.f32 0.0, %v1298
        %v1300 = vpop.f32.mrf.mxu0
        %1301 = vdwg.mxu0
        %v1303 = vsel %vm1047, %v1280, 0
        %v1306 = vsel %vm1190, %v950, 0
        %1308 = vmatpush.bf16.msra.mxu0 0
        %1309 = vmatpush.bf16.msra.mxu0 0
        %1310 = vmatpush.bf16.msra.mxu0 0
        %1311 = vmatpush.bf16.msra.mxu0 0
        %1312 = vmatpush.bf16.msra.mxu0 0
        %1313 = vmatpush.bf16.msra.mxu0 0
        %1314 = vmatpush.bf16.msra.mxu0 0
        %1315 = vmatpush.bf16.msra.mxu0 %v1306
        %1316 = vmatmul.bf16.gmra.mxu0 %v1303
        %v1317 = vpop.f32.mrf.mxu0
        %v1318 = vadd.f32 0.0, %v1317
        %v1319 = vpop.f32.mrf.mxu0
        %1320 = vdwg.mxu0
        %v1322 = vsel %vm1047, %v1281, 0
        %v1325 = vsel %vm1190, %v951, 0
        %1327 = vmatpush.bf16.msra.mxu0 0
        %1328 = vmatpush.bf16.msra.mxu0 0
        %1329 = vmatpush.bf16.msra.mxu0 0
        %1330 = vmatpush.bf16.msra.mxu0 0
        %1331 = vmatpush.bf16.msra.mxu0 0
        %1332 = vmatpush.bf16.msra.mxu0 0
        %1333 = vmatpush.bf16.msra.mxu0 0
        %1334 = vmatpush.bf16.msra.mxu0 %v1325
        %1335 = vmatmul.bf16.gmra.mxu0 %v1322
        %v1336 = vpop.f32.mrf.mxu0
        %v1337 = vadd.f32 0.0, %v1336
        %v1338 = vpop.f32.mrf.mxu0
        %1339 = vdwg.mxu0
        %v1341 = vsel %vm1047, %v1282, 0
        %v1344 = vsel %vm1190, %v952, 0
        %1346 = vmatpush.bf16.msra.mxu0 0
        %1347 = vmatpush.bf16.msra.mxu0 0
        %1348 = vmatpush.bf16.msra.mxu0 0
        %1349 = vmatpush.bf16.msra.mxu0 0
        %1350 = vmatpush.bf16.msra.mxu0 0
        %1351 = vmatpush.bf16.msra.mxu0 0
        %1352 = vmatpush.bf16.msra.mxu0 0
        %1353 = vmatpush.bf16.msra.mxu0 %v1344
        %1354 = vmatmul.bf16.gmra.mxu0 %v1341
        %v1355 = vpop.f32.mrf.mxu0
        %v1356 = vadd.f32 0.0, %v1355
        %v1357 = vpop.f32.mrf.mxu0
        %1358 = vdwg.mxu0
        %v1359 = vsel %vm970, %v1299, 0.0
        %v1360 = vsel %vm970, %v1318, 0.0
        %v1361 = vadd.f32 %v1359, %v1360
        %v1362 = vsel %vm970, %v1337, 0.0
        %v1363 = vadd.f32 %v1361, %v1362
        %v1364 = vsel %vm970, %v1356, 0.0
        %v1365 = vadd.f32 %v1363, %v1364
        %v1367 = vperm.slane %v953, 0
        %v1369 = vadd.f32 %v1365, %v1367
        %v1370 = vadd.f32 %v931, %v1369
        %v1371 = vld [vmem:[#allocation16] sm:$0x1]
        %v1372 = vld [vmem:[#allocation17] sm:$0x1]
        %v1373 = vsel %vm970, %v1370, 0.0
        %1374 = vadd.xlane.f32.xlu0 %v1373
        %v1375 = vpop.xlane.xlu0 %1374
        %v1376 = vrcp.pop 32.0
        %v1377 = vmul.f32 32.0, %v1376
        %v1378 = vsub.f32 1.0, %v1377
        %v1379 = vmul.f32 %v1376, %v1378
        %v1380 = vadd.f32 %v1376, %v1379
        %vm1381 = vweird.f32 %v1376
        %v1382 = vsel %vm1381, %v1376, %v1380
        %v1383 = vmul.f32 %v1375, %v1382
        %v1384 = vsub.f32 %v1370, %v1383
        %v1385 = vmul.f32 %v1384, %v1384
        %v1386 = vsel %vm970, %v1385, 0.0
        %1387 = vadd.xlane.f32.xlu0 %v1386
        %v1388 = vpop.xlane.xlu0 %1387
        %v1389 = vmul.f32 %v1388, %v1382
        %v1390 = vadd.f32 %v1389, 1e-05
        %v1391 = vrsqrt.pop %v1390
        %v1392 = vmul.f32 %v1391, %v1390
        %v1393 = vmul.f32 %v1392, %v1391
        %v1394 = vmul.f32 0.5, %v1393
        %v1395 = vsub.f32 1.5, %v1394
        %v1396 = vmul.f32 %v1391, %v1395
        %vm1397 = vweird.f32 %v1390
        %vm1398 = vweird.f32 %v1391
        %vm1399 = vmor %vm1397, %vm1398
        %v1400 = vsel %vm1399, %v1391, %v1396
        %v1401 = vmul.f32 %v1384, %v1400
        %v1403 = vperm.slane %v1371, 0
        %v1405 = vmul.f32 %v1401, %v1403
        %v1407 = vperm.slane %v1372, 0
        %v1409 = vadd.f32 %v1405, %v1407
        %v1410 = vld [vmem:[#allocation7] sm:$0xf]
        %v1411 = vld [vmem:[#allocation7 + $0x4] sm:$0xf]
        %v1412 = vld [vmem:[#allocation7 + $0x8] sm:$0xf]
        %v1413 = vld [vmem:[#allocation7 + $0xc] sm:$0xf]
        %v1414 = vld [vmem:[#allocation8] sm:$0x1]
        %v1415 = vld [vmem:[#allocation10] sm:$0xf]
        %v1416 = vld [vmem:[#allocation10 + $0x4] sm:$0xf]
        %v1417 = vld [vmem:[#allocation10 + $0x8] sm:$0xf]
        %v1418 = vld [vmem:[#allocation10 + $0xc] sm:$0xf]
        %v1419 = vld [vmem:[#allocation11] sm:$0x1]
        %v1420 = vld [vmem:[#allocation13] sm:$0xf]
        %v1421 = vld [vmem:[#allocation13 + $0x4] sm:$0xf]
        %v1422 = vld [vmem:[#allocation13 + $0x8] sm:$0xf]
        %v1423 = vld [vmem:[#allocation13 + $0xc] sm:$0xf]
        %v1424 = vld [vmem:[#allocation14] sm:$0x1]
        %v1425 = vpack.c.bf16 %v1409, %v1409
        %v1427 = vperm.slane %v1414, 0
        %v1433 = vunpack.c.l.b16 %v1410
        %v1434 = vunpack.c.l.b16 %v1411
        %v1435 = vunpack.c.l.b16 %v1412
        %v1436 = vunpack.c.l.b16 %v1413
        %v1437 = vpack.c.b16 %v1434, %v1433
        %v1438 = vpack.c.b16 %v1436, %v1435
        %v1442 = vsel %vm970, %v1425, 0
        %1444 = vmatpush.bf16.msra.mxu0 0
        %1445 = vmatpush.bf16.msra.mxu0 0
        %1446 = vmatpush.bf16.msra.mxu0 0
        %1447 = vmatpush.bf16.msra.mxu0 0
        %1448 = vmatpush.bf16.msra.mxu0 0
        %1449 = vmatpush.bf16.msra.mxu0 0
        %1450 = vmatpush.bf16.msra.mxu0 %v1438
        %1451 = vmatpush.bf16.msra.mxu0 %v1437
        %1452 = vmatmul.bf16.gmra.mxu0 %v1442
        %v1453 = vpop.f32.mrf.mxu0
        %v1454 = vadd.f32 %v1427, %v1453
        %v1455 = vpop.f32.mrf.mxu0
        %1456 = vdwg.mxu0
        %v1457 = vpack.c.bf16 %v929, %v929
        %v1459 = vperm.slane %v1419, 0
        %v1465 = vunpack.c.l.b16 %v1415
        %v1466 = vunpack.c.l.b16 %v1416
        %v1467 = vunpack.c.l.b16 %v1417
        %v1468 = vunpack.c.l.b16 %v1418
        %v1469 = vpack.c.b16 %v1466, %v1465
        %v1470 = vpack.c.b16 %v1468, %v1467
        %v1474 = vsel %vm970, %v1457, 0
        %1476 = vmatpush.bf16.msra.mxu0 0
        %1477 = vmatpush.bf16.msra.mxu0 0
        %1478 = vmatpush.bf16.msra.mxu0 0
        %1479 = vmatpush.bf16.msra.mxu0 0
        %1480 = vmatpush.bf16.msra.mxu0 0
        %1481 = vmatpush.bf16.msra.mxu0 0
        %1482 = vmatpush.bf16.msra.mxu0 %v1470
        %1483 = vmatpush.bf16.msra.mxu0 %v1469
        %1484 = vmatmul.bf16.gmra.mxu0 %v1474
        %v1485 = vpop.f32.mrf.mxu0
        %v1486 = vadd.f32 %v1459, %v1485
        %v1487 = vpop.f32.mrf.mxu0
        %1488 = vdwg.mxu0
        %1490 = vrot.lane.b32.xlu0 %v1454, 120
        %v1491 = vpop.permute.xlu0 %1490
        %1493 = vrot.lane.b32.xlu0 %v1454, 112
        %v1494 = vpop.permute.xlu0 %1493
        %1496 = vrot.lane.b32.xlu0 %v1454, 104
        %v1497 = vpop.permute.xlu0 %1496
        %1500 = vrot.lane.b32.xlu0 %v1486, 120
        %v1501 = vpop.permute.xlu0 %1500
        %1503 = vrot.lane.b32.xlu0 %v1486, 112
        %v1504 = vpop.permute.xlu0 %1503
        %1506 = vrot.lane.b32.xlu0 %v1486, 104
        %v1507 = vpop.permute.xlu0 %1506
        %v1509 = vpack.c.bf16 %v1454, %v1454
        %v1510 = vpack.c.bf16 %v1491, %v1491
        %v1511 = vpack.c.bf16 %v1494, %v1494
        %v1512 = vpack.c.bf16 %v1497, %v1497
        %v1513 = vpack.c.bf16 %v1486, %v1486
        %v1514 = vpack.c.bf16 %v1501, %v1501
        %v1515 = vpack.c.bf16 %v1504, %v1504
        %v1516 = vpack.c.bf16 %v1507, %v1507
        %v1518 = vsel %vm1047, %v1509, 0
        %v1521 = vsel %vm1047, %v1513, 0
        %1523 = vmatpush.bf16.xpose.msra.mxu0 0
        %1524 = vmatpush.bf16.xpose.msra.mxu0 0
        %1525 = vmatpush.bf16.xpose.msra.mxu0 0
        %1526 = vmatpush.bf16.xpose.msra.mxu0 0
        %1527 = vmatpush.bf16.xpose.msra.mxu0 0
        %1528 = vmatpush.bf16.xpose.msra.mxu0 0
        %1529 = vmatpush.bf16.xpose.msra.mxu0 0
        %1530 = vmatpush.bf16.xpose.msra.mxu0 %v1521
        %1531 = vmatmul.bf16.gmra.mxu0 %v1518
        %v1532 = vpop.f32.mrf.mxu0
        %v1533 = vadd.f32 0.0, %v1532
        %v1534 = vpop.f32.mrf.mxu0
        %1535 = vdwg.mxu0
        %v1537 = vsel %vm1047, %v1510, 0
        %v1540 = vsel %vm1047, %v1514, 0
        %1542 = vmatpush.bf16.xpose.msra.mxu0 0
        %1543 = vmatpush.bf16.xpose.msra.mxu0 0
        %1544 = vmatpush.bf16.xpose.msra.mxu0 0
        %1545 = vmatpush.bf16.xpose.msra.mxu0 0
        %1546 = vmatpush.bf16.xpose.msra.mxu0 0
        %1547 = vmatpush.bf16.xpose.msra.mxu0 0
        %1548 = vmatpush.bf16.xpose.msra.mxu0 0
        %1549 = vmatpush.bf16.xpose.msra.mxu0 %v1540
        %1550 = vmatmul.bf16.gmra.mxu0 %v1537
        %v1551 = vpop.f32.mrf.mxu0
        %v1552 = vadd.f32 0.0, %v1551
        %v1553 = vpop.f32.mrf.mxu0
        %1554 = vdwg.mxu0
        %v1556 = vsel %vm1047, %v1511, 0
        %v1559 = vsel %vm1047, %v1515, 0
        %1561 = vmatpush.bf16.xpose.msra.mxu0 0
        %1562 = vmatpush.bf16.xpose.msra.mxu0 0
        %1563 = vmatpush.bf16.xpose.msra.mxu0 0
        %1564 = vmatpush.bf16.xpose.msra.mxu0 0
        %1565 = vmatpush.bf16.xpose.msra.mxu0 0
        %1566 = vmatpush.bf16.xpose.msra.mxu0 0
        %1567 = vmatpush.bf16.xpose.msra.mxu0 0
        %1568 = vmatpush.bf16.xpose.msra.mxu0 %v1559
        %1569 = vmatmul.bf16.gmra.mxu0 %v1556
        %v1570 = vpop.f32.mrf.mxu0
        %v1571 = vadd.f32 0.0, %v1570
        %v1572 = vpop.f32.mrf.mxu0
        %1573 = vdwg.mxu0
        %v1575 = vsel %vm1047, %v1512, 0
        %v1578 = vsel %vm1047, %v1516, 0
        %1580 = vmatpush.bf16.xpose.msra.mxu0 0
        %1581 = vmatpush.bf16.xpose.msra.mxu0 0
        %1582 = vmatpush.bf16.xpose.msra.mxu0 0
        %1583 = vmatpush.bf16.xpose.msra.mxu0 0
        %1584 = vmatpush.bf16.xpose.msra.mxu0 0
        %1585 = vmatpush.bf16.xpose.msra.mxu0 0
        %1586 = vmatpush.bf16.xpose.msra.mxu0 0
        %1587 = vmatpush.bf16.xpose.msra.mxu0 %v1578
        %1588 = vmatmul.bf16.gmra.mxu0 %v1575
        %v1589 = vpop.f32.mrf.mxu0
        %v1590 = vadd.f32 0.0, %v1589
        %v1591 = vpop.f32.mrf.mxu0
        %1592 = vdwg.mxu0
        %v1593 = vmul.f32 %v1533, 0.35355338
        %v1594 = vmul.f32 %v1552, 0.35355338
        %v1595 = vmul.f32 %v1571, 0.35355338
        %v1596 = vmul.f32 %v1590, 0.35355338
        %v1597 = vsel %vm1047, %v1593, -inf
        %1598 = vmax.xlane.f32.xlu0 %v1597
        %v1599 = vpop.xlane.xlu0 %1598
        %v1600 = vsel %vm1047, %v1594, -inf
        %1601 = vmax.xlane.f32.xlu0 %v1600
        %v1602 = vpop.xlane.xlu0 %1601
        %v1603 = vsel %vm1047, %v1595, -inf
        %1604 = vmax.xlane.f32.xlu0 %v1603
        %v1605 = vpop.xlane.xlu0 %1604
        %v1606 = vsel %vm1047, %v1596, -inf
        %1607 = vmax.xlane.f32.xlu0 %v1606
        %v1608 = vpop.xlane.xlu0 %1607
        %v1609 = vsub.f32 %v1593, %v1599
        %v1610 = vsub.f32 %v1594, %v1602
        %v1611 = vsub.f32 %v1595, %v1605
        %v1612 = vsub.f32 %v1596, %v1608
        %v1613 = vmul.f32 %v1609, 1.442695
        %v1614 = vpow.pop %v1613
        %v1615 = vmul.f32 %v1610, 1.442695
        %v1616 = vpow.pop %v1615
        %v1617 = vmul.f32 %v1611, 1.442695
        %v1618 = vpow.pop %v1617
        %v1619 = vmul.f32 %v1612, 1.442695
        %v1620 = vpow.pop %v1619
        %v1621 = vsel %vm1047, %v1614, 0.0
        %1622 = vadd.xlane.f32.xlu0 %v1621
        %v1623 = vpop.xlane.xlu0 %1622
        %v1624 = vsel %vm1047, %v1616, 0.0
        %1625 = vadd.xlane.f32.xlu0 %v1624
        %v1626 = vpop.xlane.xlu0 %1625
        %v1627 = vsel %vm1047, %v1618, 0.0
        %1628 = vadd.xlane.f32.xlu0 %v1627
        %v1629 = vpop.xlane.xlu0 %1628
        %v1630 = vsel %vm1047, %v1620, 0.0
        %1631 = vadd.xlane.f32.xlu0 %v1630
        %v1632 = vpop.xlane.xlu0 %1631
        %v1633 = vrcp.pop %v1623
        %v1634 = vrcp.pop %v1626
        %v1635 = vrcp.pop %v1629
        %v1636 = vrcp.pop %v1632
        %v1637 = vmul.f32 %v1614, %v1633
        %v1638 = vmul.f32 %v1616, %v1634
        %v1639 = vmul.f32 %v1618, %v1635
        %v1640 = vmul.f32 %v1620, %v1636
        %v1641 = vpack.c.bf16 %v1637, %v1637
        %v1642 = vpack.c.bf16 %v1638, %v1638
        %v1643 = vpack.c.bf16 %v1639, %v1639
        %v1644 = vpack.c.bf16 %v1640, %v1640
        %v1646 = vunpack.c.l.b16 %v1513
        %v1647 = vpack.c.b16 %v1646, %v1646
        %1648 = vrot.lane.b32.xlu0 %v1647, 96
        %v1649 = vpop.permute.xlu0 %1648
        %v1651 = vsel %vm1047, %v1641, 0
        %v1654 = vsel %vm1190, %v1649, 0
        %1656 = vmatpush.bf16.msra.mxu0 0
        %1657 = vmatpush.bf16.msra.mxu0 0
        %1658 = vmatpush.bf16.msra.mxu0 0
        %1659 = vmatpush.bf16.msra.mxu0 0
        %1660 = vmatpush.bf16.msra.mxu0 0
        %1661 = vmatpush.bf16.msra.mxu0 0
        %1662 = vmatpush.bf16.msra.mxu0 0
        %1663 = vmatpush.bf16.msra.mxu0 %v1654
        %1664 = vmatmul.bf16.gmra.mxu0 %v1651
        %v1665 = vpop.f32.mrf.mxu0
        %v1666 = vadd.f32 0.0, %v1665
        %v1667 = vpop.f32.mrf.mxu0
        %1668 = vdwg.mxu0
        %v1670 = vunpack.c.l.b16 %v1514
        %v1671 = vpack.c.b16 %v1670, %v1670
        %1672 = vrot.lane.b32.xlu0 %v1671, 96
        %v1673 = vpop.permute.xlu0 %1672
        %v1675 = vsel %vm1047, %v1642, 0
        %v1678 = vsel %vm1190, %v1673, 0
        %1680 = vmatpush.bf16.msra.mxu0 0
        %1681 = vmatpush.bf16.msra.mxu0 0
        %1682 = vmatpush.bf16.msra.mxu0 0
        %1683 = vmatpush.bf16.msra.mxu0 0
        %1684 = vmatpush.bf16.msra.mxu0 0
        %1685 = vmatpush.bf16.msra.mxu0 0
        %1686 = vmatpush.bf16.msra.mxu0 0
        %1687 = vmatpush.bf16.msra.mxu0 %v1678
        %1688 = vmatmul.bf16.gmra.mxu0 %v1675
        %v1689 = vpop.f32.mrf.mxu0
        %v1690 = vadd.f32 0.0, %v1689
        %v1691 = vpop.f32.mrf.mxu0
        %1692 = vdwg.mxu0
        %v1694 = vunpack.c.l.b16 %v1515
        %v1695 = vpack.c.b16 %v1694, %v1694
        %1696 = vrot.lane.b32.xlu0 %v1695, 96
        %v1697 = vpop.permute.xlu0 %1696
        %v1699 = vsel %vm1047, %v1643, 0
        %v1702 = vsel %vm1190, %v1697, 0
        %1704 = vmatpush.bf16.msra.mxu0 0
        %1705 = vmatpush.bf16.msra.mxu0 0
        %1706 = vmatpush.bf16.msra.mxu0 0
        %1707 = vmatpush.bf16.msra.mxu0 0
        %1708 = vmatpush.bf16.msra.mxu0 0
        %1709 = vmatpush.bf16.msra.mxu0 0
        %1710 = vmatpush.bf16.msra.mxu0 0
        %1711 = vmatpush.bf16.msra.mxu0 %v1702
        %1712 = vmatmul.bf16.gmra.mxu0 %v1699
        %v1713 = vpop.f32.mrf.mxu0
        %v1714 = vadd.f32 0.0, %v1713
        %v1715 = vpop.f32.mrf.mxu0
        %1716 = vdwg.mxu0
        %v1718 = vunpack.c.l.b16 %v1516
        %v1719 = vpack.c.b16 %v1718, %v1718
        %1720 = vrot.lane.b32.xlu0 %v1719, 96
        %v1721 = vpop.permute.xlu0 %1720
        %v1723 = vsel %vm1047, %v1644, 0
        %v1726 = vsel %vm1190, %v1721, 0
        %1728 = vmatpush.bf16.msra.mxu0 0
        %1729 = vmatpush.bf16.msra.mxu0 0
        %1730 = vmatpush.bf16.msra.mxu0 0
        %1731 = vmatpush.bf16.msra.mxu0 0
        %1732 = vmatpush.bf16.msra.mxu0 0
        %1733 = vmatpush.bf16.msra.mxu0 0
        %1734 = vmatpush.bf16.msra.mxu0 0
        %1735 = vmatpush.bf16.msra.mxu0 %v1726
        %1736 = vmatmul.bf16.gmra.mxu0 %v1723
        %v1737 = vpop.f32.mrf.mxu0
        %v1738 = vadd.f32 0.0, %v1737
        %v1739 = vpop.f32.mrf.mxu0
        %1740 = vdwg.mxu0
        %v1741 = vpack.c.bf16 %v1666, %v1666
        %v1742 = vpack.c.bf16 %v1690, %v1690
        %v1743 = vpack.c.bf16 %v1714, %v1714
        %v1744 = vpack.c.bf16 %v1738, %v1738
        %v1746 = vsel %vm1047, %v1741, 0
        %v1749 = vsel %vm1190, %v1420, 0
        %1751 = vmatpush.bf16.msra.mxu0 0
        %1752 = vmatpush.bf16.msra.mxu0 0
        %1753 = vmatpush.bf16.msra.mxu0 0
        %1754 = vmatpush.bf16.msra.mxu0 0
        %1755 = vmatpush.bf16.msra.mxu0 0
        %1756 = vmatpush.bf16.msra.mxu0 0
        %1757 = vmatpush.bf16.msra.mxu0 0
        %1758 = vmatpush.bf16.msra.mxu0 %v1749
        %1759 = vmatmul.bf16.gmra.mxu0 %v1746
        %v1760 = vpop.f32.mrf.mxu0
        %v1761 = vadd.f32 0.0, %v1760
        %v1762 = vpop.f32.mrf.mxu0
        %1763 = vdwg.mxu0
        %v1765 = vsel %vm1047, %v1742, 0
        %v1768 = vsel %vm1190, %v1421, 0
        %1770 = vmatpush.bf16.msra.mxu0 0
        %1771 = vmatpush.bf16.msra.mxu0 0
        %1772 = vmatpush.bf16.msra.mxu0 0
        %1773 = vmatpush.bf16.msra.mxu0 0
        %1774 = vmatpush.bf16.msra.mxu0 0
        %1775 = vmatpush.bf16.msra.mxu0 0
        %1776 = vmatpush.bf16.msra.mxu0 0
        %1777 = vmatpush.bf16.msra.mxu0 %v1768
        %1778 = vmatmul.bf16.gmra.mxu0 %v1765
        %v1779 = vpop.f32.mrf.mxu0
        %v1780 = vadd.f32 0.0, %v1779
        %v1781 = vpop.f32.mrf.mxu0
        %1782 = vdwg.mxu0
        %v1784 = vsel %vm1047, %v1743, 0
        %v1787 = vsel %vm1190, %v1422, 0
        %1789 = vmatpush.bf16.msra.mxu0 0
        %1790 = vmatpush.bf16.msra.mxu0 0
        %1791 = vmatpush.bf16.msra.mxu0 0
        %1792 = vmatpush.bf16.msra.mxu0 0
        %1793 = vmatpush.bf16.msra.mxu0 0
        %1794 = vmatpush.bf16.msra.mxu0 0
        %1795 = vmatpush.bf16.msra.mxu0 0
        %1796 = vmatpush.bf16.msra.mxu0 %v1787
        %1797 = vmatmul.bf16.gmra.mxu0 %v1784
        %v1798 = vpop.f32.mrf.mxu0
        %v1799 = vadd.f32 0.0, %v1798
        %v1800 = vpop.f32.mrf.mxu0
        %1801 = vdwg.mxu0
        %v1803 = vsel %vm1047, %v1744, 0
        %v1806 = vsel %vm1190, %v1423, 0
        %1808 = vmatpush.bf16.msra.mxu0 0
        %1809 = vmatpush.bf16.msra.mxu0 0
        %1810 = vmatpush.bf16.msra.mxu0 0
        %1811 = vmatpush.bf16.msra.mxu0 0
        %1812 = vmatpush.bf16.msra.mxu0 0
        %1813 = vmatpush.bf16.msra.mxu0 0
        %1814 = vmatpush.bf16.msra.mxu0 0
        %1815 = vmatpush.bf16.msra.mxu0 %v1806
        %1816 = vmatmul.bf16.gmra.mxu0 %v1803
        %v1817 = vpop.f32.mrf.mxu0
        %v1818 = vadd.f32 0.0, %v1817
        %v1819 = vpop.f32.mrf.mxu0
        %1820 = vdwg.mxu0
        %v1821 = vsel %vm970, %v1761, 0.0
        %v1822 = vsel %vm970, %v1780, 0.0
        %v1823 = vadd.f32 %v1821, %v1822
        %v1824 = vsel %vm970, %v1799, 0.0
        %v1825 = vadd.f32 %v1823, %v1824
        %v1826 = vsel %vm970, %v1818, 0.0
        %v1827 = vadd.f32 %v1825, %v1826
        %v1829 = vperm.slane %v1424, 0
        %v1831 = vadd.f32 %v1827, %v1829
        %v1832 = vadd.f32 %v1409, %v1831
        %v1833 = vld [vmem:[#allocation19] sm:$0x1]
        %v1834 = vld [vmem:[#allocation20] sm:$0x1]
        %v1835 = vsel %vm970, %v1832, 0.0
        %1836 = vadd.xlane.f32.xlu0 %v1835
        %v1837 = vpop.xlane.xlu0 %1836
        %v1838 = vmul.f32 %v1837, %v1382
        %v1839 = vsub.f32 %v1832, %v1838
        %v1840 = vmul.f32 %v1839, %v1839
        %v1841 = vsel %vm970, %v1840, 0.0
        %1842 = vadd.xlane.f32.xlu0 %v1841
        %v1843 = vpop.xlane.xlu0 %1842
        %v1844 = vmul.f32 %v1843, %v1382
        %v1845 = vadd.f32 %v1844, 1e-05
        %v1846 = vrsqrt.pop %v1845
        %v1847 = vmul.f32 %v1846, %v1845
        %v1848 = vmul.f32 %v1847, %v1846
        %v1849 = vmul.f32 0.5, %v1848
        %v1850 = vsub.f32 1.5, %v1849
        %v1851 = vmul.f32 %v1846, %v1850
        %vm1852 = vweird.f32 %v1845
        %vm1853 = vweird.f32 %v1846
        %vm1854 = vmor %vm1852, %vm1853
        %v1855 = vsel %vm1854, %v1846, %v1851
        %v1856 = vmul.f32 %v1839, %v1855
        %v1858 = vperm.slane %v1833, 0
        %v1860 = vmul.f32 %v1856, %v1858
        %v1862 = vperm.slane %v1834, 0
        %v1864 = vadd.f32 %v1860, %v1862
        %v1865 = vld [vmem:[#allocation22] sm:$0xf]
        %v1866 = vld [vmem:[#allocation22 + $0x4] sm:$0xf]
        %v1867 = vld [vmem:[#allocation22 + $0x8] sm:$0xf]
        %v1868 = vld [vmem:[#allocation22 + $0xc] sm:$0xf]
        %v1869 = vld [vmem:[%s20] sm:$0xf]
        %v1870 = vld [vmem:[%s20 + $0x4] sm:$0xf]
        %v1871 = vld [vmem:[%s20 + $0x8] sm:$0xf]
        %v1872 = vld [vmem:[%s20 + $0xc] sm:$0xf]
        %v1873 = vld [vmem:[%s20 + $0x10] sm:$0xf]
        %v1874 = vld [vmem:[%s20 + $0x14] sm:$0xf]
        %v1875 = vld [vmem:[%s20 + $0x18] sm:$0xf]
        %v1876 = vld [vmem:[%s20 + $0x1c] sm:$0xf]
        %v1877 = vpack.c.bf16 %v1864, %v1864
        %v1878 = vld [vmem:[#allocation23] sm:$0x1]
        %v1880 = vperm.slane %v1878, 0
        %v1886 = vunpack.c.l.b16 %v1865
        %v1887 = vunpack.c.l.b16 %v1866
        %v1888 = vunpack.c.l.b16 %v1867
        %v1889 = vunpack.c.l.b16 %v1868
        %v1890 = vpack.c.b16 %v1887, %v1886
        %v1891 = vpack.c.b16 %v1889, %v1888
        %v1895 = vsel %vm970, %v1877, 0
        %1897 = vmatpush.bf16.msra.mxu0 0
        %1898 = vmatpush.bf16.msra.mxu0 0
        %1899 = vmatpush.bf16.msra.mxu0 0
        %1900 = vmatpush.bf16.msra.mxu0 0
        %1901 = vmatpush.bf16.msra.mxu0 0
        %1902 = vmatpush.bf16.msra.mxu0 0
        %1903 = vmatpush.bf16.msra.mxu0 %v1891
        %1904 = vmatpush.bf16.msra.mxu0 %v1890
        %1905 = vmatmul.bf16.gmra.mxu0 %v1895
        %v1906 = vpop.f32.mrf.mxu0
        %v1907 = vadd.f32 %v1880, %v1906
        %v1908 = vpop.f32.mrf.mxu0
        %1909 = vdwg.mxu0
        %v1910 = vmax.f32 %v1907, 0.0
        %v1911 = vpack.c.bf16 %v1910, %v1910
        %v1912 = vld [vmem:[%s21] sm:$0x1]
        %v1914 = vperm.slane %v1912, 0
        %v1924 = vunpack.c.l.b16 %v1869
        %v1925 = vunpack.c.l.b16 %v1870
        %v1926 = vunpack.c.l.b16 %v1871
        %v1927 = vunpack.c.l.b16 %v1872
        %v1928 = vunpack.c.l.b16 %v1873
        %v1929 = vunpack.c.l.b16 %v1874
        %v1930 = vunpack.c.l.b16 %v1875
        %v1931 = vunpack.c.l.b16 %v1876
        %v1932 = vpack.c.b16 %v1925, %v1924
        %v1933 = vpack.c.b16 %v1927, %v1926
        %v1934 = vpack.c.b16 %v1929, %v1928
        %v1935 = vpack.c.b16 %v1931, %v1930
        %vm1940 = vcmask 523264
        %v1942 = vsel %vm1940, %v1911, 0
        %1944 = vmatpush.bf16.msra.mxu0 0
        %1945 = vmatpush.bf16.msra.mxu0 0
        %1946 = vmatpush.bf16.msra.mxu0 0
        %1947 = vmatpush.bf16.msra.mxu0 0
        %1948 = vmatpush.bf16.msra.mxu0 %v1935
        %1949 = vmatpush.bf16.msra.mxu0 %v1934
        %1950 = vmatpush.bf16.msra.mxu0 %v1933
        %1951 = vmatpush.bf16.msra.mxu0 %v1932
        %1952 = vmatmul.bf16.gmra.mxu0 %v1942
        %v1953 = vpop.f32.mrf.mxu0
        %v1954 = vadd.f32 %v1914, %v1953
        %v1955 = vpop.f32.mrf.mxu0
        %1956 = vdwg.mxu0
        %v1957 = vadd.f32 %v1864, %v1954
        %1958 = vst.msk [vmem:[%s917] sm:$0xff] %vm970, %v1957
        %s1959 = sand.u32 %s538, 1
        %s1960 = scalar_lea.sflag [#allocation4], %s1959
        %s1961 = sand.u32 %s538, 1
        %s1962 = smul.addr %s1961, 8
        %s1963 = scalar_lea.vmem [#allocation25], %s1962
        // Predicated region
        $region165: #{tpu_custom_call.1} parent=107 // pred_check
          %p1964 = pneg %p548
        $region166: #{tpu_custom_call.1} parent=107 // pred_check_branch
          %1966 = sbr.rel (%p1964) target = $region168
        $region167: #{tpu_custom_call.1} parent=107 // pred_region
          %1968 = vsyncadd %s1960, 0
          %s1969 = sadd.s32 %s49, %s48
          %s1970 = smul.addr %s1969, 8
          %s1971 = scalar_lea.hbm %s22, %s1970
          %s1973 = sshll.u32 %s1963, 4
          %s1974 = int_to_ptr.vmem [resolvable:$true] %s1973
          %s1975 = sshll.u32 %s1971, 4
          %s1976 = int_to_ptr.hbm [resolvable:$true] %s1975
          %1978 = dma.vmem_to_hbm [thread:$0]  %s1974, 128, %s1976, %s1960
        $region168: #{tpu_custom_call.1} parent=107 // pred_fallthru
          _
      $region108: #{tpu_custom_call.1} parent=5 // pred_fallthru
        _
      %p1979 = scmp.le.s32.totalorder 2, %s39
      // Predicated region
      $region169: #{tpu_custom_call.1} parent=5 // pred_check
        %p1980 = pneg %p1979
      $region170: #{tpu_custom_call.1} parent=5 // pred_check_branch
        %1982 = sbr.rel (%p1980) target = $region172
      $region171: #{tpu_custom_call.1} parent=5 // pred_region
        %s1983 = ssub.s32 %s39, 2
        // Predicated region
        $region173: #{tpu_custom_call.1} parent=171 // pred_check
          %p1984 = pneg %p554
        $region174: #{tpu_custom_call.1} parent=171 // pred_check_branch
          %1986 = sbr.rel (%p1984) target = $region176
        $region175: #{tpu_custom_call.1} parent=171 // pred_region
          %s1987 = sand.u32 %s539, 1
          %s1988 = scalar_lea.sflag [#allocation4], %s1987
          %s1989 = sand.u32 %s539, 1
          %s1990 = smul.addr %s1989, 8
          %s1991 = scalar_lea.vmem [#allocation25], %s1990
          %1993 = dma.done %s1988, 128
        $region176: #{tpu_custom_call.1} parent=171 // pred_fallthru
          _
      $region172: #{tpu_custom_call.1} parent=5 // pred_fallthru
        _
    $region6: #{tpu_custom_call.1} parent=1 // loop_footer
      %s43 = sadd.s32 1, %s39
    $region7: #{tpu_custom_call.1} parent=1 // loop_footer_branch
      %38 = sbr.rel target = $region3
    $region8: #{tpu_custom_call.1} parent=1 // loop_exit
      _
    %1994 = vsyncpa [#allocation3], 1
    %s1995 = scalar_lea.sflag [#allocation3], 1
    %1996 = vsyncpa %s1995, 1
    %1997 = vsyncpa [#allocation6], 1
    %1998 = vsyncpa [#allocation9], 1
    %1999 = vsyncpa [#allocation12], 1
    %2000 = vsyncpa [#allocation15], 1
    %2001 = vsyncpa [#allocation18], 1
    %2002 = vsyncpa [#allocation21], 1
    %2003 = vsyncpa [#allocation24], 1
    %2004 = vsyncpa [#allocation4], 1
    %s2005 = scalar_lea.sflag [#allocation4], 1
    %2006 = vsyncpa %s2005, 1

</llo_original>
